<compile_context>
chip_gen: v6e
topology: v6e:2x2x1
jax: 0.10.0
libtpu: 0.0.40
codegen_flags: <defaults>
</compile_context>

<pallas_src>
import jax
import jax.numpy as jnp
from jax.experimental import pallas as pl
from jax.experimental.pallas import tpu as pltpu

LANE = 128
SUBLANE = 8


def _round_up(x, m):
    return ((x + m - 1) // m) * m


def _ceil_div(a, b):
    return -(-a // b)


def generator_kernel(z_ref,
                     w1_ref, b1_ref,
                     w2_ref, b2_ref,
                     w3_ref, b3_ref,
                     w4_ref, b4_ref,
                     out_ref,
                     h3_ref):
    # Layers 1-3 depend only on the batch tile (grid axis 0).  Compute them
    # once per batch tile -- on the first output-column block -- and cache the
    # MXU-ready bf16 result in VMEM scratch for the remaining column blocks.
    @pl.when(pl.program_id(1) == 0)
    def _():
        h = z_ref[...].astype(jnp.bfloat16)
        h = jnp.dot(h, w1_ref[...], preferred_element_type=jnp.float32)
        h = jnp.maximum(h + b1_ref[...], 0.0)

        h = jnp.dot(h.astype(jnp.bfloat16), w2_ref[...],
                    preferred_element_type=jnp.float32)
        h = jnp.maximum(h + b2_ref[...], 0.0)

        h = jnp.dot(h.astype(jnp.bfloat16), w3_ref[...],
                    preferred_element_type=jnp.float32)
        h = jnp.maximum(h + b3_ref[...], 0.0)
        h3_ref[...] = h.astype(jnp.bfloat16)

    # Final layer for this (batch tile, output-column block).
    h4 = jnp.dot(h3_ref[...], w4_ref[...], preferred_element_type=jnp.float32)
    out_ref[...] = jnp.tanh(h4 + b4_ref[...]).astype(out_ref.dtype)


def generator_forward(z, params, *, out_dtype=jnp.float32, max_tile_b=256):
    """z: [B, latent] float32 -> [B, image_size] `out_dtype`."""
    (w1, b1), (w2, b2), (w3, b3), (w4, b4) = params
    B, latent = z.shape
    h1d, h2d, h3d = w1.shape[1], w2.shape[1], w3.shape[1]
    image_size = w4.shape[1]
    out_itemsize = jnp.dtype(out_dtype).itemsize

    # ---- lane-align the output feature dim (unmasked, lane-dense stores) ---
    image_pad = _round_up(image_size, LANE)
    if image_pad != image_size:
        w4 = jnp.pad(w4, ((0, 0), (0, image_pad - image_size)))
        b4 = jnp.pad(b4, ((0, 0), (0, image_pad - image_size)))

    # ---- batch tiling: minimal padding, MXU-filling M, >=2 steps when big --
    min_tiles = 2 if B > LANE else 1          # keep both v7x TCs busy
    n_btiles = max(_ceil_div(B, max_tile_b), min_tiles)
    tb = _round_up(_ceil_div(B, n_btiles), SUBLANE)
    B_pad = n_btiles * tb
    if B_pad != B:
        z = jnp.pad(z, ((0, B_pad - B), (0, 0)))

    # ---- output-column blocking of the last layer -------------------------
    # Single batch tile => no batch-axis pipelining, so block w4/b4/out over
    # columns to overlap the (dominant) w4 DMA with compute.  Multiple batch
    # tiles => keep w4 whole and VMEM-resident (constant index_map).
    if n_btiles == 1 and image_pad > LANE:
        tn = 256 if image_pad % 256 == 0 else LANE
    else:
        tn = image_pad
    n_cblocks = image_pad // tn

    # bf16 weights for peak MXU throughput; biases stay f32 for the epilogue.
    weights = [w.astype(jnp.bfloat16) for w in (w1, w2, w3, w4)]
    biases = [b.astype(jnp.float32).reshape(1, -1) for b in (b1, b2, b3, b4)]

    grid = (n_btiles, n_cblocks)

    def resident(shape):
        # Constant index_map: DMA'd into VMEM once, resident for all steps.
        # TODO(synk): pipeline_mode=pl.Buffered(1) would reclaim the second
        # buffer of these constant blocks; skipped as it is marginal here.
        return pl.BlockSpec(shape, lambda i, j: (0, 0))

    in_specs = [pl.BlockSpec((tb, latent), lambda i, j: (i, 0))]   # z tile
    for w, b in zip(weights[:3], biases[:3]):
        in_specs.append(resident(w.shape))
        in_specs.append(resident(b.shape))
    in_specs.append(pl.BlockSpec((h3d, tn), lambda i, j: (0, j)))  # w4 cols
    in_specs.append(pl.BlockSpec((1, tn), lambda i, j: (0, j)))    # b4 cols

    out_specs = pl.BlockSpec((tb, tn), lambda i, j: (i, j))
    scratch_shapes = [pltpu.VMEM((tb, h3d), jnp.bfloat16)]          # cached h3

    # ---- explicit VMEM budget (v7x: 64 MiB phys; v5e scoped default 16 MiB)
    resident_bytes = 2 * sum(w.size * 2 + b.size * 4
                             for w, b in zip(weights[:3], biases[:3]))
    per_step_bytes = 2 * (tb * latent * 4            # z (double-buffered)
                          + h3d * tn * 2 + tn * 4    # w4/b4 column block
                          + tb * tn * out_itemsize)  # out tile
    temps_bytes = tb * (h1d + h2d + h3d + tn) * 4    # in-kernel f32 temporaries
    scratch_bytes = tb * h3d * 2
    vmem_bytes = int(1.25 * (resident_bytes + per_step_bytes
                             + temps_bytes + scratch_bytes)) + (1 << 20)
    vmem_bytes = min(max(vmem_bytes, 8 << 20), 64 << 20)

    # Advisory cost estimate for XLA's scheduler.
    dims = [latent, h1d, h2d, h3d, image_pad]
    flops = 2 * B_pad * sum(dims[k] * dims[k + 1] for k in range(4))
    bytes_accessed = (B_pad * latent * 4
                      + B_pad * image_pad * out_itemsize
                      + sum(w.size * 2 for w in weights)
                      + sum(b.size * 4 for b in biases))
    cost = pl.CostEstimate(flops=flops,
                           transcendentals=B_pad * image_pad,
                           bytes_accessed=bytes_accessed)

    out = pl.pallas_call(
        generator_kernel,
        out_shape=jax.ShapeDtypeStruct((B_pad, image_pad), out_dtype),
        grid_spec=pltpu.PrefetchScalarGridSpec(
            num_scalar_prefetch=0,
            grid=grid,
            in_specs=in_specs,
            out_specs=out_specs,
            scratch_shapes=scratch_shapes,
        ),
        compiler_params=pltpu.CompilerParams(
            # batch axis shards across v7x TensorCores; column axis carries
            # the h3 scratch dependency -> "arbitrary".
            dimension_semantics=("parallel", "arbitrary"),
            vmem_limit_bytes=vmem_bytes),
        cost_estimate=cost,
    )(z, weights[0], biases[0], weights[1], biases[1],
      weights[2], biases[2], weights[3], biases[3])

    # Skip the post-kernel slice (extra HBM round-trip) when nothing padded.
    if B_pad == B and image_pad == image_size:
        return out
    return out[:B, :image_size]


def init_params(key, latent_size, image_size):
    dims = [latent_size, 128, 256, 512, image_size]
    params = []
    for idx in range(4):
        key, kw, kb = jax.random.split(key, 3)
        fan_in, fan_out = dims[idx], dims[idx + 1]
        bound = 1.0 / jnp.sqrt(fan_in)  # PyTorch nn.Linear default init range
        w = jax.random.uniform(kw, (fan_in, fan_out), jnp.float32, -bound, bound)
        b = jax.random.uniform(kb, (1, fan_out), jnp.float32, -bound, bound)
        params.append((w, b))
    return params


def reference_forward(z, params):
    # Emulates the kernel's bf16-in / f32-accumulate matmuls (intentional
    # quantization for MXU throughput; not bit-exact vs a pure-f32 PyTorch run).
    h = z
    for i, (w, b) in enumerate(params):
        wq = w.astype(jnp.bfloat16).astype(jnp.float32)
        hq = h.astype(jnp.bfloat16).astype(jnp.float32)
        h = jnp.dot(hq, wq, precision=jax.lax.Precision.HIGHEST) + b
        h = jnp.maximum(h, 0.0) if i < 3 else jnp.tanh(h)
    return h


if __name__ == "__main__":
    latent_size = 64
    image_size = 784   # 28x28 flattened (exercises the lane-pad path: 896)

    key = jax.random.PRNGKey(0)
    key, kz1, kz2 = jax.random.split(key, 3)
    params = init_params(key, latent_size, image_size)

    # Small batch: single batch tile -> column-blocked last layer, grid (1, 7).
    z_small = jax.random.normal(kz1, (16, latent_size), jnp.float32)
    out_small = jax.block_until_ready(generator_forward(z_small, params))
    ref_small = reference_forward(z_small, params)
    assert out_small.shape == (16, image_size)
    assert jnp.allclose(out_small, ref_small, atol=2e-4, rtol=2e-4)

    # Larger batch: >=2 batch tiles (both v7x TCs busy), resident w4,
    # padding-minimizing tile choice (130 -> tb=72, B_pad=144).
    z_big = jax.random.normal(kz2, (130, latent_size), jnp.float32)
    out_big = jax.block_until_ready(generator_forward(z_big, params))
    ref_big = reference_forward(z_big, params)
    assert out_big.shape == (130, image_size)
    assert jnp.allclose(out_big, ref_big, atol=2e-4, rtol=2e-4)

    print("KERNEL_OK")
</pallas_src>

<mosaic_0001>
module attributes {stable_mosaic.version = 11 : i64} {
  func.func @generator_kernel(%arg0: i32, %arg1: i32, %arg2: memref<16x64xf32, #tpu.memory_space<vmem>>, %arg3: memref<64x128xbf16, #tpu.memory_space<vmem>>, %arg4: memref<1x128xf32, #tpu.memory_space<vmem>>, %arg5: memref<128x256xbf16, #tpu.memory_space<vmem>>, %arg6: memref<1x256xf32, #tpu.memory_space<vmem>>, %arg7: memref<256x512xbf16, #tpu.memory_space<vmem>>, %arg8: memref<1x512xf32, #tpu.memory_space<vmem>>, %arg9: memref<512x128xbf16, #tpu.memory_space<vmem>>, %arg10: memref<1x128xf32, #tpu.memory_space<vmem>>, %arg11: memref<16x128xf32, #tpu.memory_space<vmem>>, %arg12: memref<16x512xbf16, #tpu.memory_space<vmem>>) attributes {dimension_semantics = [#tpu.dimension_semantics<parallel>, #tpu.dimension_semantics<arbitrary>], iteration_bounds = array<i64: 1, 7>, scalar_prefetch = 0 : i64, scratch_operands = 1 : i64, tpu.core_type = #tpu.core_type<tc>, window_params = [{transform_indices = @transform_0, window_bounds = array<i64: 16, 64>}, {pipeline_mode = #tpu.pipeline_mode<synchronous>, transform_indices = @transform_1, window_bounds = array<i64: 64, 128>}, {pipeline_mode = #tpu.pipeline_mode<synchronous>, transform_indices = @transform_2, window_bounds = array<i64: 1, 128>}, {pipeline_mode = #tpu.pipeline_mode<synchronous>, transform_indices = @transform_3, window_bounds = array<i64: 128, 256>}, {pipeline_mode = #tpu.pipeline_mode<synchronous>, transform_indices = @transform_4, window_bounds = array<i64: 1, 256>}, {pipeline_mode = #tpu.pipeline_mode<synchronous>, transform_indices = @transform_5, window_bounds = array<i64: 256, 512>}, {pipeline_mode = #tpu.pipeline_mode<synchronous>, transform_indices = @transform_6, window_bounds = array<i64: 1, 512>}, {transform_indices = @transform_7, window_bounds = array<i64: 512, 128>}, {transform_indices = @transform_8, window_bounds = array<i64: 1, 128>}, {transform_indices = @transform_9, window_bounds = array<i64: 16, 128>}]} {
    %c0_i32 = arith.constant 0 : i32
    %0 = arith.cmpi eq, %arg1, %c0_i32 : i32
    %1 = arith.extui %0 : i1 to i32
    %c0_i32_0 = arith.constant 0 : i32
    %2 = arith.cmpi ne, %1, %c0_i32_0 : i32
    scf.if %2 {
      %c0_8 = arith.constant 0 : index
      %c0_9 = arith.constant 0 : index
      %11 = vector.load %arg2[%c0_8, %c0_9] : memref<16x64xf32, #tpu.memory_space<vmem>>, vector<16x64xf32>
      %12 = arith.truncf %11 : vector<16x64xf32> to vector<16x64xbf16>
      %c0_10 = arith.constant 0 : index
      %c0_11 = arith.constant 0 : index
      %13 = vector.load %arg3[%c0_10, %c0_11] : memref<64x128xbf16, #tpu.memory_space<vmem>>, vector<64x128xbf16>
      %cst_12 = arith.constant dense<0.000000e+00> : vector<16x128xf32>
      %14 = tpu.matmul %12, %13, %cst_12 {dimension_numbers = #tpu.dot_dimension_numbers<[1], [0], [0], [1], [0, 0, 1, 1], [], []>} : vector<16x64xbf16>, vector<64x128xbf16>, vector<16x128xf32> -> vector<16x128xf32>
      %c0_13 = arith.constant 0 : index
      %c0_14 = arith.constant 0 : index
      %15 = vector.load %arg4[%c0_13, %c0_14] : memref<1x128xf32, #tpu.memory_space<vmem>>, vector<1x128xf32>
      %16 = vector.broadcast %15 : vector<1x128xf32> to vector<16x128xf32>
      %17 = arith.addf %14, %16 : vector<16x128xf32>
      %cst_15 = arith.constant 0.000000e+00 : f32
      %18 = vector.broadcast %cst_15 : f32 to vector<16x128xf32>
      %19 = arith.maximumf %17, %18 : vector<16x128xf32>
      %20 = arith.truncf %19 : vector<16x128xf32> to vector<16x128xbf16>
      %c0_16 = arith.constant 0 : index
      %c0_17 = arith.constant 0 : index
      %21 = vector.load %arg5[%c0_16, %c0_17] : memref<128x256xbf16, #tpu.memory_space<vmem>>, vector<128x256xbf16>
      %cst_18 = arith.constant dense<0.000000e+00> : vector<16x256xf32>
      %22 = tpu.matmul %20, %21, %cst_18 {dimension_numbers = #tpu.dot_dimension_numbers<[1], [0], [0], [1], [0, 0, 1, 1], [], []>} : vector<16x128xbf16>, vector<128x256xbf16>, vector<16x256xf32> -> vector<16x256xf32>
      %c0_19 = arith.constant 0 : index
      %c0_20 = arith.constant 0 : index
      %23 = vector.load %arg6[%c0_19, %c0_20] : memref<1x256xf32, #tpu.memory_space<vmem>>, vector<1x256xf32>
      %24 = vector.broadcast %23 : vector<1x256xf32> to vector<16x256xf32>
      %25 = arith.addf %22, %24 : vector<16x256xf32>
      %cst_21 = arith.constant 0.000000e+00 : f32
      %26 = vector.broadcast %cst_21 : f32 to vector<16x256xf32>
      %27 = arith.maximumf %25, %26 : vector<16x256xf32>
      %28 = arith.truncf %27 : vector<16x256xf32> to vector<16x256xbf16>
      %c0_22 = arith.constant 0 : index
      %c0_23 = arith.constant 0 : index
      %29 = vector.load %arg7[%c0_22, %c0_23] : memref<256x512xbf16, #tpu.memory_space<vmem>>, vector<256x512xbf16>
      %cst_24 = arith.constant dense<0.000000e+00> : vector<16x512xf32>
      %30 = tpu.matmul %28, %29, %cst_24 {dimension_numbers = #tpu.dot_dimension_numbers<[1], [0], [0], [1], [0, 0, 1, 1], [], []>} : vector<16x256xbf16>, vector<256x512xbf16>, vector<16x512xf32> -> vector<16x512xf32>
      %c0_25 = arith.constant 0 : index
      %c0_26 = arith.constant 0 : index
      %31 = vector.load %arg8[%c0_25, %c0_26] : memref<1x512xf32, #tpu.memory_space<vmem>>, vector<1x512xf32>
      %32 = vector.broadcast %31 : vector<1x512xf32> to vector<16x512xf32>
      %33 = arith.addf %30, %32 : vector<16x512xf32>
      %cst_27 = arith.constant 0.000000e+00 : f32
      %34 = vector.broadcast %cst_27 : f32 to vector<16x512xf32>
      %35 = arith.maximumf %33, %34 : vector<16x512xf32>
      %36 = arith.truncf %35 : vector<16x512xf32> to vector<16x512xbf16>
      %c0_28 = arith.constant 0 : index
      %c0_29 = arith.constant 0 : index
      %37 = vector.load %arg12[%c0_28, %c0_29] : memref<16x512xbf16, #tpu.memory_space<vmem>>, vector<16x512xbf16>
      tpu.vector_store %arg12[%c0_28, %c0_29], %36 {strides = array<i32>} : memref<16x512xbf16, #tpu.memory_space<vmem>>, vector<16x512xbf16>,
    } else {
    }
    %c0 = arith.constant 0 : index
    %c0_1 = arith.constant 0 : index
    %3 = vector.load %arg12[%c0, %c0_1] : memref<16x512xbf16, #tpu.memory_space<vmem>>, vector<16x512xbf16>
    %c0_2 = arith.constant 0 : index
    %c0_3 = arith.constant 0 : index
    %4 = vector.load %arg9[%c0_2, %c0_3] : memref<512x128xbf16, #tpu.memory_space<vmem>>, vector<512x128xbf16>
    %cst = arith.constant dense<0.000000e+00> : vector<16x128xf32>
    %5 = tpu.matmul %3, %4, %cst {dimension_numbers = #tpu.dot_dimension_numbers<[1], [0], [0], [1], [0, 0, 1, 1], [], []>} : vector<16x512xbf16>, vector<512x128xbf16>, vector<16x128xf32> -> vector<16x128xf32>
    %c0_4 = arith.constant 0 : index
    %c0_5 = arith.constant 0 : index
    %6 = vector.load %arg10[%c0_4, %c0_5] : memref<1x128xf32, #tpu.memory_space<vmem>>, vector<1x128xf32>
    %7 = vector.broadcast %6 : vector<1x128xf32> to vector<16x128xf32>
    %8 = arith.addf %5, %7 : vector<16x128xf32>
    %9 = math.tanh %8 : vector<16x128xf32>
    %c0_6 = arith.constant 0 : index
    %c0_7 = arith.constant 0 : index
    %10 = vector.load %arg11[%c0_6, %c0_7] : memref<16x128xf32, #tpu.memory_space<vmem>>, vector<16x128xf32>
    tpu.vector_store %arg11[%c0_6, %c0_7], %9 {strides = array<i32>} : memref<16x128xf32, #tpu.memory_space<vmem>>, vector<16x128xf32>,
    return
  }
  func.func @transform_0(%arg0: i32, %arg1: i32) -> (i32, i32) {
    %c0_i32 = arith.constant 0 : i32
    %c0_i32_0 = arith.constant 0 : i32
    return %arg0, %c0_i32 : i32, i32
  }
  func.func @transform_1(%arg0: i32, %arg1: i32) -> (i32, i32) {
    %c0_i32 = arith.constant 0 : i32
    %c0_i32_0 = arith.constant 0 : i32
    %c0_i32_1 = arith.constant 0 : i32
    return %c0_i32, %c0_i32_0 : i32, i32
  }
  func.func @transform_2(%arg0: i32, %arg1: i32) -> (i32, i32) {
    %c0_i32 = arith.constant 0 : i32
    %c0_i32_0 = arith.constant 0 : i32
    %c0_i32_1 = arith.constant 0 : i32
    return %c0_i32, %c0_i32_0 : i32, i32
  }
  func.func @transform_3(%arg0: i32, %arg1: i32) -> (i32, i32) {
    %c0_i32 = arith.constant 0 : i32
    %c0_i32_0 = arith.constant 0 : i32
    %c0_i32_1 = arith.constant 0 : i32
    return %c0_i32, %c0_i32_0 : i32, i32
  }
  func.func @transform_4(%arg0: i32, %arg1: i32) -> (i32, i32) {
    %c0_i32 = arith.constant 0 : i32
    %c0_i32_0 = arith.constant 0 : i32
    %c0_i32_1 = arith.constant 0 : i32
    return %c0_i32, %c0_i32_0 : i32, i32
  }
  func.func @transform_5(%arg0: i32, %arg1: i32) -> (i32, i32) {
    %c0_i32 = arith.constant 0 : i32
    %c0_i32_0 = arith.constant 0 : i32
    %c0_i32_1 = arith.constant 0 : i32
    return %c0_i32, %c0_i32_0 : i32, i32
  }
  func.func @transform_6(%arg0: i32, %arg1: i32) -> (i32, i32) {
    %c0_i32 = arith.constant 0 : i32
    %c0_i32_0 = arith.constant 0 : i32
    %c0_i32_1 = arith.constant 0 : i32
    return %c0_i32, %c0_i32_0 : i32, i32
  }
  func.func @transform_7(%arg0: i32, %arg1: i32) -> (i32, i32) {
    %c0_i32 = arith.constant 0 : i32
    %c0_i32_0 = arith.constant 0 : i32
    return %c0_i32, %arg1 : i32, i32
  }
  func.func @transform_8(%arg0: i32, %arg1: i32) -> (i32, i32) {
    %c0_i32 = arith.constant 0 : i32
    %c0_i32_0 = arith.constant 0 : i32
    return %c0_i32, %arg1 : i32, i32
  }
  func.func @transform_9(%arg0: i32, %arg1: i32) -> (i32, i32) {
    %c0_i32 = arith.constant 0 : i32
    return %arg0, %arg1 : i32, i32
  }
}

</mosaic_0001>

<llo_original>
// kernel: tpu_custom_call.1
$region0: #{tpu_custom_call.1}
  #allocation0 [shape = 'u32[]', space=smem, size = 0x4, offset = 0x4, fixed_abs, tag = 'smem constant byte address 0x4 - core index']
  #allocation1 [shape = 'u32[144,128]{1,0:T(1,128)}', space=vmem, size = 0x12000, scoped, tag = 'internal scratch']
  #allocation2 [shape = 'bf16[16,512]{1,0:T(8,128)(2,1)}', space=vmem, size = 0x4000, scoped, tag = 'scratch operand']
  %s0 = inlined_call_operand.hbm [shape: f32[16,64], index: 0, kind: input, shape index: {}]
  %s1 = inlined_call_operand.hbm [shape: bf16[64,128], index: 1, kind: input, shape index: {}]
  %s2 = inlined_call_operand.vmem [shape: f32[1,128], index: 2, kind: input, shape index: {}]
  %s3 = inlined_call_operand.hbm [shape: bf16[128,256], index: 3, kind: input, shape index: {}]
  %s4 = inlined_call_operand.vmem [shape: f32[1,256], index: 4, kind: input, shape index: {}]
  %s5 = inlined_call_operand.hbm [shape: bf16[256,512], index: 5, kind: input, shape index: {}]
  %s6 = inlined_call_operand.vmem [shape: f32[1,512], index: 6, kind: input, shape index: {}]
  %s7 = inlined_call_operand.hbm [shape: bf16[512,896], index: 7, kind: input, shape index: {}]
  %s8 = inlined_call_operand.vmem [shape: f32[1,896], index: 8, kind: input, shape index: {}]
  %s9 = inlined_call_operand.hbm [shape: f32[16,896], index: 9, kind: output, shape index: {}]
  %s10 = sld [smem:[#allocation0]]
  $region93: #{tpu_custom_call.1} parent=0
    _
  %s12 = ssub.s32 1, %s10
  %s13 = scalar_select 0, %s12, %s10
  $region1: #{tpu_custom_call.1} parent=0
    #allocation3 [shape = 'u8[8192]{0}', space=vmem, size = 0x2000, scoped, tag = 'input window, operand 0, single buffered']
    #allocation4 [shape = 's32[2]{0}', space=sflag, size = 0x8, scoped, tag = 'scoped memory for tpu_custom_call.1']
    #allocation5 [shape = 's32[2]{0}', space=sflag, size = 0x8, scoped, tag = 'scoped memory for tpu_custom_call.1']
    #allocation6 [shape = 'u8[16384]{0}', space=vmem, size = 0x4000, scoped, tag = 'input window, operand 1, single buffered']
    #allocation7 [shape = 's32[1]{0}', space=sflag, size = 0x4, scoped, tag = 'scoped memory for tpu_custom_call.1']
    #allocation8 [shape = 'u8[65536]{0}', space=vmem, size = 0x10000, scoped, tag = 'input window, operand 3, single buffered']
    #allocation9 [shape = 'u8[262144]{0}', space=vmem, size = 0x40000, scoped, tag = 'input window, operand 5, single buffered']
    #allocation10 [shape = 's32[1]{0}', space=sflag, size = 0x4, scoped, tag = 'scoped memory for tpu_custom_call.1']
    #allocation11 [shape = 'u8[262144]{0}', space=vmem, size = 0x40000, scoped, tag = 'input window, operand 7']
    #allocation12 [shape = 'u8[16384]{0}', space=vmem, size = 0x4000, scoped, tag = 'output window, operand 0']
    %14 = vsyncpa [#allocation4], 0
    %15 = vsyncpa [#allocation7], 0
    %16 = vsyncpa [#allocation10], 0
    %17 = vsyncpa [#allocation5], 0
    %s18 = scalar_lea.sflag [#allocation5], 1
    %19 = vsyncpa %s18, 0
    loop: start=0, step=1, limit=9
    $region2: #{tpu_custom_call.1} parent=1 // loop_pre_header
      _
    $region3: #{tpu_custom_call.1} parent=1 // loop_header
      %s21 = sphi 0, %s25
      %p22 = scmp.ge.s32.totalorder %s21, 9
      %s28 = sphi 0, %s40
      %s29 = sphi 0, %s36
      %s30 = sphi 0, %s28
      %s31 = sphi 0, %s29
      %s32 = sphi 0, %s30
      %s33 = sphi 0, %s31
      %s43 = sphi 0, %s45
      %s46 = sphi 0, %s43
      %s47 = sphi 0, %s46
      %s63 = sphi 0, %s47
      %s67 = sphi 0, %s67
      %s69 = sphi 0, %s67
      %s70 = sphi 0, %s69
      %s84 = sphi 0, %s70
      %s88 = sphi 0, %s88
      %s90 = sphi 0, %s88
      %s91 = sphi 0, %s90
      %s105 = sphi 0, %s91
      %s109 = sphi 0, %s109
      %s111 = sphi 0, %s109
      %s112 = sphi 0, %s111
      %s126 = sphi 0, %s112
      %s130 = sphi 0, %s130
      %s132 = sphi 0, %s130
      %s133 = sphi 0, %s132
      %s147 = sphi 0, %s133
      %s151 = sphi 0, %s151
      %s153 = sphi 0, %s151
      %s154 = sphi 0, %s153
      %s168 = sphi 0, %s154
      %s172 = sphi 0, %s172
      %s174 = sphi 0, %s172
      %s175 = sphi 0, %s174
      %s189 = sphi 0, %s175
      %s195 = sphi 0, %s197
      %s198 = sphi 0, %s195
      %s199 = sphi 0, %s198
      %s215 = sphi 0, %s199
      %s221 = sphi 0, %s223
      %s224 = sphi 0, %s221
      %s225 = sphi 0, %s224
      %s241 = sphi 0, %s225
      %s249 = sphi 0, %s251
      %s252 = sphi 0, %s249
      %s253 = sphi 0, %s252
      %s269 = sphi 0, %s253
    $region4: #{tpu_custom_call.1} parent=1 // loop_header_branch
      %24 = sbr.rel (%p22) target = $region8
    $region5: #{tpu_custom_call.1} parent=1 // loop_body
      %s26 = ssub.s32 %s21, 1
      %s27 = ssub.s32 %s21, 2
      %s34 = sadd.s32 1, %s29
      %p35 = scmp.ge.s32.totalorder %s34, 7
      %s36 = scalar_select %p35, 0, %s34
      %s37 = sadd.s32 1, %s28
      %s38 = scalar_select %p35, %s37, %s28
      %p39 = scmp.ge.s32.totalorder %s38, 1
      %s40 = scalar_select %p39, 0, %s38
      %s41 = ssub.s32 %s28, %s40
      %p42 = scmp.eq.s32.totalorder %s41, 0
      %s44 = sadd.s32 %s43, 1
      %s45 = scalar_select %p42, %s43, %s44
      %p48 = pneg %p42
      %p49 = scmp.eq.s32.totalorder %s21, 6
      %p50 = por %p48, %p49
      %p51 = scmp.ne.s32.totalorder %s43, %s46
      %p52 = scmp.eq.s32.totalorder %s21, 0
      %p53 = por %p51, %p52
      %p54 = scmp.ne.s32.totalorder %s43, %s46
      %p55 = scmp.eq.s32.totalorder %s26, 6
      %p56 = por %p54, %p55
      %p57 = scmp.ne.s32.totalorder %s46, %s47
      %p58 = scmp.eq.s32.totalorder %s26, 0
      %p59 = por %p57, %p58
      %p60 = scmp.ne.s32.totalorder %s46, %s47
      %p61 = scmp.eq.s32.totalorder %s27, 6
      %p62 = por %p60, %p61
      %p64 = scmp.ne.s32.totalorder %s47, %s63
      %p65 = scmp.eq.s32.totalorder %s27, 0
      %p66 = por %p64, %p65
      %s68 = sadd.s32 %s67, 1
      %p71 = scmp.eq.s32.totalorder %s21, 6
      %p72 = scmp.ne.s32.totalorder %s67, %s69
      %p73 = scmp.eq.s32.totalorder %s21, 0
      %p74 = por %p72, %p73
      %p75 = scmp.ne.s32.totalorder %s67, %s69
      %p76 = scmp.eq.s32.totalorder %s26, 6
      %p77 = por %p75, %p76
      %p78 = scmp.ne.s32.totalorder %s69, %s70
      %p79 = scmp.eq.s32.totalorder %s26, 0
      %p80 = por %p78, %p79
      %p81 = scmp.ne.s32.totalorder %s69, %s70
      %p82 = scmp.eq.s32.totalorder %s27, 6
      %p83 = por %p81, %p82
      %p85 = scmp.ne.s32.totalorder %s70, %s84
      %p86 = scmp.eq.s32.totalorder %s27, 0
      %p87 = por %p85, %p86
      %s89 = sadd.s32 %s88, 1
      %p92 = scmp.eq.s32.totalorder %s21, 6
      %p93 = scmp.ne.s32.totalorder %s88, %s90
      %p94 = scmp.eq.s32.totalorder %s21, 0
      %p95 = por %p93, %p94
      %p96 = scmp.ne.s32.totalorder %s88, %s90
      %p97 = scmp.eq.s32.totalorder %s26, 6
      %p98 = por %p96, %p97
      %p99 = scmp.ne.s32.totalorder %s90, %s91
      %p100 = scmp.eq.s32.totalorder %s26, 0
      %p101 = por %p99, %p100
      %p102 = scmp.ne.s32.totalorder %s90, %s91
      %p103 = scmp.eq.s32.totalorder %s27, 6
      %p104 = por %p102, %p103
      %p106 = scmp.ne.s32.totalorder %s91, %s105
      %p107 = scmp.eq.s32.totalorder %s27, 0
      %p108 = por %p106, %p107
      %s110 = sadd.s32 %s109, 1
      %p113 = scmp.eq.s32.totalorder %s21, 6
      %p114 = scmp.ne.s32.totalorder %s109, %s111
      %p115 = scmp.eq.s32.totalorder %s21, 0
      %p116 = por %p114, %p115
      %p117 = scmp.ne.s32.totalorder %s109, %s111
      %p118 = scmp.eq.s32.totalorder %s26, 6
      %p119 = por %p117, %p118
      %p120 = scmp.ne.s32.totalorder %s111, %s112
      %p121 = scmp.eq.s32.totalorder %s26, 0
      %p122 = por %p120, %p121
      %p123 = scmp.ne.s32.totalorder %s111, %s112
      %p124 = scmp.eq.s32.totalorder %s27, 6
      %p125 = por %p123, %p124
      %p127 = scmp.ne.s32.totalorder %s112, %s126
      %p128 = scmp.eq.s32.totalorder %s27, 0
      %p129 = por %p127, %p128
      %s131 = sadd.s32 %s130, 1
      %p134 = scmp.eq.s32.totalorder %s21, 6
      %p135 = scmp.ne.s32.totalorder %s130, %s132
      %p136 = scmp.eq.s32.totalorder %s21, 0
      %p137 = por %p135, %p136
      %p138 = scmp.ne.s32.totalorder %s130, %s132
      %p139 = scmp.eq.s32.totalorder %s26, 6
      %p140 = por %p138, %p139
      %p141 = scmp.ne.s32.totalorder %s132, %s133
      %p142 = scmp.eq.s32.totalorder %s26, 0
      %p143 = por %p141, %p142
      %p144 = scmp.ne.s32.totalorder %s132, %s133
      %p145 = scmp.eq.s32.totalorder %s27, 6
      %p146 = por %p144, %p145
      %p148 = scmp.ne.s32.totalorder %s133, %s147
      %p149 = scmp.eq.s32.totalorder %s27, 0
      %p150 = por %p148, %p149
      %s152 = sadd.s32 %s151, 1
      %p155 = scmp.eq.s32.totalorder %s21, 6
      %p156 = scmp.ne.s32.totalorder %s151, %s153
      %p157 = scmp.eq.s32.totalorder %s21, 0
      %p158 = por %p156, %p157
      %p159 = scmp.ne.s32.totalorder %s151, %s153
      %p160 = scmp.eq.s32.totalorder %s26, 6
      %p161 = por %p159, %p160
      %p162 = scmp.ne.s32.totalorder %s153, %s154
      %p163 = scmp.eq.s32.totalorder %s26, 0
      %p164 = por %p162, %p163
      %p165 = scmp.ne.s32.totalorder %s153, %s154
      %p166 = scmp.eq.s32.totalorder %s27, 6
      %p167 = por %p165, %p166
      %p169 = scmp.ne.s32.totalorder %s154, %s168
      %p170 = scmp.eq.s32.totalorder %s27, 0
      %p171 = por %p169, %p170
      %s173 = sadd.s32 %s172, 1
      %p176 = scmp.eq.s32.totalorder %s21, 6
      %p177 = scmp.ne.s32.totalorder %s172, %s174
      %p178 = scmp.eq.s32.totalorder %s21, 0
      %p179 = por %p177, %p178
      %p180 = scmp.ne.s32.totalorder %s172, %s174
      %p181 = scmp.eq.s32.totalorder %s26, 6
      %p182 = por %p180, %p181
      %p183 = scmp.ne.s32.totalorder %s174, %s175
      %p184 = scmp.eq.s32.totalorder %s26, 0
      %p185 = por %p183, %p184
      %p186 = scmp.ne.s32.totalorder %s174, %s175
      %p187 = scmp.eq.s32.totalorder %s27, 6
      %p188 = por %p186, %p187
      %p190 = scmp.ne.s32.totalorder %s175, %s189
      %p191 = scmp.eq.s32.totalorder %s27, 0
      %p192 = por %p190, %p191
      %s193 = ssub.s32 %s29, %s36
      %p194 = scmp.eq.s32.totalorder %s193, 0
      %s196 = sadd.s32 %s195, 1
      %s197 = scalar_select %p194, %s195, %s196
      %p200 = pneg %p194
      %p201 = scmp.eq.s32.totalorder %s21, 6
      %p202 = por %p200, %p201
      %p203 = scmp.ne.s32.totalorder %s195, %s198
      %p204 = scmp.eq.s32.totalorder %s21, 0
      %p205 = por %p203, %p204
      %p206 = scmp.ne.s32.totalorder %s195, %s198
      %p207 = scmp.eq.s32.totalorder %s26, 6
      %p208 = por %p206, %p207
      %p209 = scmp.ne.s32.totalorder %s198, %s199
      %p210 = scmp.eq.s32.totalorder %s26, 0
      %p211 = por %p209, %p210
      %p212 = scmp.ne.s32.totalorder %s198, %s199
      %p213 = scmp.eq.s32.totalorder %s27, 6
      %p214 = por %p212, %p213
      %p216 = scmp.ne.s32.totalorder %s199, %s215
      %p217 = scmp.eq.s32.totalorder %s27, 0
      %p218 = por %p216, %p217
      %s219 = ssub.s32 %s29, %s36
      %p220 = scmp.eq.s32.totalorder %s219, 0
      %s222 = sadd.s32 %s221, 1
      %s223 = scalar_select %p220, %s221, %s222
      %p226 = pneg %p220
      %p227 = scmp.eq.s32.totalorder %s21, 6
      %p228 = por %p226, %p227
      %p229 = scmp.ne.s32.totalorder %s221, %s224
      %p230 = scmp.eq.s32.totalorder %s21, 0
      %p231 = por %p229, %p230
      %p232 = scmp.ne.s32.totalorder %s221, %s224
      %p233 = scmp.eq.s32.totalorder %s26, 6
      %p234 = por %p232, %p233
      %p235 = scmp.ne.s32.totalorder %s224, %s225
      %p236 = scmp.eq.s32.totalorder %s26, 0
      %p237 = por %p235, %p236
      %p238 = scmp.ne.s32.totalorder %s224, %s225
      %p239 = scmp.eq.s32.totalorder %s27, 6
      %p240 = por %p238, %p239
      %p242 = scmp.ne.s32.totalorder %s225, %s241
      %p243 = scmp.eq.s32.totalorder %s27, 0
      %p244 = por %p242, %p243
      %s245 = ssub.s32 %s28, %s40
      %s246 = ssub.s32 %s29, %s36
      %s247 = sor.u32 %s245, %s246
      %p248 = scmp.eq.s32.totalorder %s247, 0
      %s250 = sadd.s32 %s249, 1
      %s251 = scalar_select %p248, %s249, %s250
      %p254 = pneg %p248
      %p255 = scmp.eq.s32.totalorder %s21, 6
      %p256 = por %p254, %p255
      %p257 = scmp.ne.s32.totalorder %s249, %s252
      %p258 = scmp.eq.s32.totalorder %s21, 0
      %p259 = por %p257, %p258
      %p260 = scmp.ne.s32.totalorder %s249, %s252
      %p261 = scmp.eq.s32.totalorder %s26, 6
      %p262 = por %p260, %p261
      %p263 = scmp.ne.s32.totalorder %s252, %s253
      %p264 = scmp.eq.s32.totalorder %s26, 0
      %p265 = por %p263, %p264
      %p266 = scmp.ne.s32.totalorder %s252, %s253
      %p267 = scmp.eq.s32.totalorder %s27, 6
      %p268 = por %p266, %p267
      %p270 = scmp.ne.s32.totalorder %s253, %s269
      %p271 = scmp.eq.s32.totalorder %s27, 0
      %p272 = por %p270, %p271
      %p273 = scmp.le.s32.totalorder 1, %s21
      %p274 = scmp.lt.s32.totalorder %s21, 8
      %p275 = pnand %p273, %p274
      %p276 = pneg %p275
      // Predicated region
      $region9: #{tpu_custom_call.1} parent=5 // pred_check
        _
      $region10: #{tpu_custom_call.1} parent=5 // pred_check_branch
        %278 = sbr.rel (%p275) target = $region12
      $region11: #{tpu_custom_call.1} parent=5 // pred_region
        %s279 = ssub.s32 %s21, 1
        // Predicated region
        $region13: #{tpu_custom_call.1} parent=11 // pred_check
          %p280 = pneg %p59
        $region14: #{tpu_custom_call.1} parent=11 // pred_check_branch
          %282 = sbr.rel (%p280) target = $region16
        $region15: #{tpu_custom_call.1} parent=11 // pred_region
          %s283 = smul.u32 2, %s30
          %s285 = ssub.s32 256, 256
          %286 = vsyncadd [#allocation4], %s285
          %s287 = smul.addr %s283, 128
          %s288 = scalar_lea.hbm %s0, %s287
          %s289 = sshll.u32 [#allocation3], 4
          %s290 = int_to_ptr.vmem [resolvable:$true] %s289
          %295 = dma.hbm_to_vmem [thread:$0]  %s288, 256, %s290, [#allocation4], 128, 128, 8
        $region16: #{tpu_custom_call.1} parent=11 // pred_fallthru
          _
        // Predicated region
        $region17: #{tpu_custom_call.1} parent=11 // pred_check
          %p296 = pneg %p80
        $region18: #{tpu_custom_call.1} parent=11 // pred_check_branch
          %298 = sbr.rel (%p296) target = $region20
        $region19: #{tpu_custom_call.1} parent=11 // pred_region
          %s300 = ssub.s32 512, 512
          %301 = vsyncadd [#allocation7], %s300
          %s302 = sshll.u32 [#allocation6], 4
          %s303 = int_to_ptr.vmem [resolvable:$true] %s302
          %308 = dma.hbm_to_vmem [thread:$0]  %s1, 512, %s303, [#allocation7], 64, 64, 4
        $region20: #{tpu_custom_call.1} parent=11 // pred_fallthru
          _
        // Predicated region
        $region21: #{tpu_custom_call.1} parent=11 // pred_check
          %p309 = pneg %p101
        $region22: #{tpu_custom_call.1} parent=11 // pred_check_branch
          %311 = sbr.rel (%p309) target = $region24
        $region23: #{tpu_custom_call.1} parent=11 // pred_region
          _
        $region24: #{tpu_custom_call.1} parent=11 // pred_fallthru
          _
        // Predicated region
        $region25: #{tpu_custom_call.1} parent=11 // pred_check
          %p312 = pneg %p122
        $region26: #{tpu_custom_call.1} parent=11 // pred_check_branch
          %314 = sbr.rel (%p312) target = $region28
        $region27: #{tpu_custom_call.1} parent=11 // pred_region
          %s316 = ssub.s32 2048, 2048
          %317 = vsyncadd [#allocation7], %s316
          %s318 = sshll.u32 [#allocation8], 4
          %s319 = int_to_ptr.vmem [resolvable:$true] %s318
          %324 = dma.hbm_to_vmem [thread:$0]  %s3, 2048, %s319, [#allocation7], 128, 128, 8
        $region28: #{tpu_custom_call.1} parent=11 // pred_fallthru
          _
        // Predicated region
        $region29: #{tpu_custom_call.1} parent=11 // pred_check
          %p325 = pneg %p143
        $region30: #{tpu_custom_call.1} parent=11 // pred_check_branch
          %327 = sbr.rel (%p325) target = $region32
        $region31: #{tpu_custom_call.1} parent=11 // pred_region
          _
        $region32: #{tpu_custom_call.1} parent=11 // pred_fallthru
          _
        // Predicated region
        $region33: #{tpu_custom_call.1} parent=11 // pred_check
          %p328 = pneg %p164
        $region34: #{tpu_custom_call.1} parent=11 // pred_check_branch
          %330 = sbr.rel (%p328) target = $region36
        $region35: #{tpu_custom_call.1} parent=11 // pred_region
          %s332 = ssub.s32 8192, 8192
          %333 = vsyncadd [#allocation10], %s332
          %s334 = sshll.u32 [#allocation9], 4
          %s335 = int_to_ptr.vmem [resolvable:$true] %s334
          %340 = dma.hbm_to_vmem [thread:$0]  %s5, 8192, %s335, [#allocation10], 256, 256, 16
        $region36: #{tpu_custom_call.1} parent=11 // pred_fallthru
          _
        // Predicated region
        $region37: #{tpu_custom_call.1} parent=11 // pred_check
          %p341 = pneg %p185
        $region38: #{tpu_custom_call.1} parent=11 // pred_check_branch
          %343 = sbr.rel (%p341) target = $region40
        $region39: #{tpu_custom_call.1} parent=11 // pred_region
          _
        $region40: #{tpu_custom_call.1} parent=11 // pred_fallthru
          _
      $region12: #{tpu_custom_call.1} parent=5 // pred_fallthru
        _
      %p344 = scmp.lt.s32.totalorder %s21, 7
      // Predicated region
      $region41: #{tpu_custom_call.1} parent=5 // pred_check
        %p345 = pneg %p344
      $region42: #{tpu_custom_call.1} parent=5 // pred_check_branch
        %347 = sbr.rel (%p345) target = $region44
      $region43: #{tpu_custom_call.1} parent=5 // pred_region
        // Predicated region
        $region45: #{tpu_custom_call.1} parent=43 // pred_check
          %p348 = pneg %p205
        $region46: #{tpu_custom_call.1} parent=43 // pred_check_branch
          %350 = sbr.rel (%p348) target = $region48
        $region47: #{tpu_custom_call.1} parent=43 // pred_region
          %s351 = sand.u32 %s21, 1
          %s352 = scalar_lea.sflag [#allocation4], %s351
          %s353 = sand.u32 %s195, 1
          %s354 = smul.addr %s353, 256
          %s355 = scalar_lea.vmem [#allocation11], %s354
          %s357 = ssub.s32 4096, 4096
          %358 = vsyncadd %s352, %s357
          %s359 = smul.addr %s29, 64
          %s360 = scalar_lea.hbm %s7, %s359
          %s361 = sshll.u32 %s355, 4
          %s362 = int_to_ptr.vmem [resolvable:$true] %s361
          %367 = dma.hbm_to_vmem [thread:$0]  %s360, 4096, %s362, %s352, 448, 64, 4
        $region48: #{tpu_custom_call.1} parent=43 // pred_fallthru
          _
        // Predicated region
        $region49: #{tpu_custom_call.1} parent=43 // pred_check
          %p368 = pneg %p231
        $region50: #{tpu_custom_call.1} parent=43 // pred_check_branch
          %370 = sbr.rel (%p368) target = $region52
        $region51: #{tpu_custom_call.1} parent=43 // pred_region
          %p371 = scmp.lt.s32.totalorder %s29, 6
          %s372 = scalar_select %p371, %s29, 6
          %s373 = scalar_lea.vmem %s8, %s372
        $region52: #{tpu_custom_call.1} parent=43 // pred_fallthru
          _
      $region44: #{tpu_custom_call.1} parent=5 // pred_fallthru
        _
      %p374 = scmp.le.s32.totalorder 1, %s21
      %p375 = scmp.lt.s32.totalorder %s21, 8
      %p376 = pnand %p374, %p375
      %p377 = pneg %p376
      // Predicated region
      $region53: #{tpu_custom_call.1} parent=5 // pred_check
        _
      $region54: #{tpu_custom_call.1} parent=5 // pred_check_branch
        %379 = sbr.rel (%p376) target = $region56
      $region55: #{tpu_custom_call.1} parent=5 // pred_region
        %s380 = ssub.s32 %s21, 1
        // Predicated region
        $region57: #{tpu_custom_call.1} parent=55 // pred_check
          %p381 = pneg %p59
        $region58: #{tpu_custom_call.1} parent=55 // pred_check_branch
          %383 = sbr.rel (%p381) target = $region60
        $region59: #{tpu_custom_call.1} parent=55 // pred_region
          %384 = dma.done [#allocation4], 256
        $region60: #{tpu_custom_call.1} parent=55 // pred_fallthru
          _
        // Predicated region
        $region61: #{tpu_custom_call.1} parent=55 // pred_check
          %p385 = pneg %p80
        $region62: #{tpu_custom_call.1} parent=55 // pred_check_branch
          %387 = sbr.rel (%p385) target = $region64
        $region63: #{tpu_custom_call.1} parent=55 // pred_region
          %388 = dma.done [#allocation7], 512
        $region64: #{tpu_custom_call.1} parent=55 // pred_fallthru
          _
        // Predicated region
        $region65: #{tpu_custom_call.1} parent=55 // pred_check
          %p389 = pneg %p122
        $region66: #{tpu_custom_call.1} parent=55 // pred_check_branch
          %391 = sbr.rel (%p389) target = $region68
        $region67: #{tpu_custom_call.1} parent=55 // pred_region
          %392 = dma.done [#allocation7], 2048
        $region68: #{tpu_custom_call.1} parent=55 // pred_fallthru
          _
        // Predicated region
        $region69: #{tpu_custom_call.1} parent=55 // pred_check
          %p393 = pneg %p164
        $region70: #{tpu_custom_call.1} parent=55 // pred_check_branch
          %395 = sbr.rel (%p393) target = $region72
        $region71: #{tpu_custom_call.1} parent=55 // pred_region
          %396 = dma.done [#allocation10], 8192
        $region72: #{tpu_custom_call.1} parent=55 // pred_fallthru
          _
        %s397 = sand.u32 %s26, 1
        %s398 = scalar_lea.sflag [#allocation4], %s397
        %s399 = sand.u32 %s198, 1
        %s400 = smul.addr %s399, 256
        %s401 = scalar_lea.vmem [#allocation11], %s400
        // Predicated region
        $region73: #{tpu_custom_call.1} parent=55 // pred_check
          %p402 = pneg %p211
        $region74: #{tpu_custom_call.1} parent=55 // pred_check_branch
          %404 = sbr.rel (%p402) target = $region76
        $region75: #{tpu_custom_call.1} parent=55 // pred_region
          %405 = dma.done %s398, 4096
        $region76: #{tpu_custom_call.1} parent=55 // pred_fallthru
          _
        %p406 = pneg %p59
        %p407 = pneg %p56
        %p408 = pneg %p80
        %p409 = pneg %p77
        %p410 = pneg %p101
        %p411 = pneg %p98
        %p412 = pneg %p122
        %p413 = pneg %p119
        %p414 = pneg %p143
        %p415 = pneg %p140
        %p416 = pneg %p164
        %p417 = pneg %p161
        %p418 = pneg %p185
        %p419 = pneg %p182
        %s420 = sand.u32 %s26, 1
        %s421 = scalar_lea.sflag [#allocation4], %s420
        %s422 = sand.u32 %s198, 1
        %s423 = smul.addr %s422, 256
        %s424 = scalar_lea.vmem [#allocation11], %s423
        %p425 = pneg %p211
        %p426 = pneg %p208
        %p427 = scmp.lt.s32.totalorder %s31, 6
        %s428 = scalar_select %p427, %s31, 6
        %s429 = scalar_lea.vmem %s8, %s428
        %p430 = pneg %p237
        %p431 = pneg %p234
        %p432 = pneg %p265
        %p433 = pneg %p262
        %s434 = sand.u32 %s252, 1
        %s435 = scalar_lea.sflag [#allocation5], %s434
        %s436 = sand.u32 %s252, 1
        %s437 = smul.addr %s436, 16
        %s438 = scalar_lea.vmem [#allocation12], %s437
        %s439 = smul.u32 2, %s30
        %p440 = scmp.lt.s32.totalorder %s31, 6
        %s441 = scalar_select %p440, %s31, 6
        %s442 = scalar_lea.vmem %s8, %s441
        %s443 = smul.u32 2, %s30
        %p445 = scmp.eq.s32.totalorder %s31, 0
        // Predicated region
        $region77: #{tpu_custom_call.1} parent=55 // pred_check
          %p446 = pneg %p445
        $region78: #{tpu_custom_call.1} parent=55 // pred_check_branch
          %448 = sbr.rel (%p446) target = $region80
        $region79: #{tpu_custom_call.1} parent=55 // pred_region
          %v449 = vld [vmem:[#allocation3] sm:$0xff]
          %v450 = vld [vmem:[#allocation3 + $0x8] sm:$0xff]
          %v451 = vpack.c.bf16 %v450, %v449
          %v452 = vld [vmem:[#allocation6] sm:$0xf]
          %v453 = vld [vmem:[#allocation6 + $0x4] sm:$0xf]
          %v454 = vld [vmem:[#allocation6 + $0x8] sm:$0xf]
          %v455 = vld [vmem:[#allocation6 + $0xc] sm:$0xf]
          %v456 = vld [vmem:[#allocation6 + $0x10] sm:$0xf]
          %v457 = vld [vmem:[#allocation6 + $0x14] sm:$0xf]
          %v458 = vld [vmem:[#allocation6 + $0x18] sm:$0xf]
          %v459 = vld [vmem:[#allocation6 + $0x1c] sm:$0xf]
          %v460 = vld [vmem:[%s2] sm:$0x1]
          %v462 = vlaneseq
          %v463 = vshrl.u32 %v462, 7
          %v464 = vsub.s32 0, %v463
          %v465 = vrot.slane %v460, %v464
          %v475 = vunpack.c.l.b16 %v452
          %v476 = vunpack.c.l.b16 %v453
          %v477 = vunpack.c.l.b16 %v454
          %v478 = vunpack.c.l.b16 %v455
          %v479 = vunpack.c.l.b16 %v456
          %v480 = vunpack.c.l.b16 %v457
          %v481 = vunpack.c.l.b16 %v458
          %v482 = vunpack.c.l.b16 %v459
          %v483 = vpack.c.b16 %v476, %v475
          %v484 = vpack.c.b16 %v478, %v477
          %v485 = vpack.c.b16 %v480, %v479
          %v486 = vpack.c.b16 %v482, %v481
          %vm491 = vcmask 523264
          %v493 = vsel %vm491, %v451, 0
          %495 = vmatprep.subr.bf16.mxu0 0
          %496 = vmatpush1.bf16.msra.mxu0 0
          %497 = vmatprep.subr.bf16.mxu0 0
          %498 = vmatpush1.bf16.msra.mxu0 0
          %499 = vmatprep.subr.bf16.mxu0 0
          %500 = vmatpush1.bf16.msra.mxu0 0
          %501 = vmatprep.subr.bf16.mxu0 0
          %502 = vmatpush1.bf16.msra.mxu0 0
          %503 = vmatprep.subr.bf16.mxu0 0
          %504 = vmatpush1.bf16.msra.mxu0 %v486
          %505 = vmatprep.subr.bf16.mxu0 0
          %506 = vmatpush1.bf16.msra.mxu0 %v485
          %507 = vmatprep.subr.bf16.mxu0 0
          %508 = vmatpush1.bf16.msra.mxu0 %v484
          %509 = vmatprep.subr.bf16.mxu0 0
          %510 = vmatpush1.bf16.msra.mxu0 %v483
          %511 = vmatprep.subr.bf16.mxu0 0
          %512 = vmatpush2.bf16.msra.mxu0 0
          %513 = vmatprep.subr.bf16.mxu0 0
          %514 = vmatpush2.bf16.msra.mxu0 0
          %515 = vmatprep.subr.bf16.mxu0 0
          %516 = vmatpush2.bf16.msra.mxu0 0
          %517 = vmatprep.subr.bf16.mxu0 0
          %518 = vmatpush2.bf16.msra.mxu0 0
          %519 = vmatprep.subr.bf16.mxu0 0
          %520 = vmatpush2.bf16.msra.mxu0 0
          %521 = vmatprep.subr.bf16.mxu0 0
          %522 = vmatpush2.bf16.msra.mxu0 0
          %523 = vmatprep.subr.bf16.mxu0 0
          %524 = vmatpush2.bf16.msra.mxu0 0
          %525 = vmatprep.subr.bf16.mxu0 0
          %526 = vmatpush2.bf16.msra.mxu0 0
          %527 = vmatprep.mubr.bf16.mxu0 0
          %528 = vmatmul.mubr.bf16.gmra.mxu0 %v493
          %v529 = vpop.f32.mrf.mxu0
          %v530 = vadd.f32 %v465, %v529
          %v531 = vpop.f32.mrf.mxu0
          %v532 = vpop.f32.mrf.mxu0
          %v533 = vadd.f32 %v465, %v532
          %v534 = vpop.f32.mrf.mxu0
          %535 = vdwg.mxu0
          %v536 = vmax.f32 %v530, 0.0
          %v537 = vmax.f32 %v533, 0.0
          %v538 = vpack.c.bf16 %v537, %v536
          %v539 = vld [vmem:[#allocation8] sm:$0xff]
          %v540 = vld [vmem:[#allocation8 + $0x8] sm:$0xff]
          %v541 = vld [vmem:[#allocation8 + $0x10] sm:$0xff]
          %v542 = vld [vmem:[#allocation8 + $0x18] sm:$0xff]
          %v543 = vld [vmem:[#allocation8 + $0x20] sm:$0xff]
          %v544 = vld [vmem:[#allocation8 + $0x28] sm:$0xff]
          %v545 = vld [vmem:[#allocation8 + $0x30] sm:$0xff]
          %v546 = vld [vmem:[#allocation8 + $0x38] sm:$0xff]
          %v547 = vld [vmem:[#allocation8 + $0x40] sm:$0xff]
          %v548 = vld [vmem:[#allocation8 + $0x48] sm:$0xff]
          %v549 = vld [vmem:[#allocation8 + $0x50] sm:$0xff]
          %v550 = vld [vmem:[#allocation8 + $0x58] sm:$0xff]
          %v551 = vld [vmem:[#allocation8 + $0x60] sm:$0xff]
          %v552 = vld [vmem:[#allocation8 + $0x68] sm:$0xff]
          %v553 = vld [vmem:[#allocation8 + $0x70] sm:$0xff]
          %v554 = vld [vmem:[#allocation8 + $0x78] sm:$0xff]
          %v555 = vld [vmem:[%s4] sm:$0x3]
          %v557 = vlaneseq
          %v558 = vshrl.u32 %v557, 7
          %v559 = vsub.s32 0, %v558
          %v560 = vrot.slane %v555, %v559
          %v561 = vlaneseq
          %v562 = vshrl.u32 %v561, 7
          %v563 = vsub.s32 1, %v562
          %v564 = vrot.slane %v555, %v563
          %v583 = vunpack.c.l.b16 %v539
          %v584 = vunpack.c.h.b16 %v539
          %v585 = vunpack.c.l.b16 %v540
          %v586 = vunpack.c.h.b16 %v540
          %v587 = vunpack.c.l.b16 %v541
          %v588 = vunpack.c.h.b16 %v541
          %v589 = vunpack.c.l.b16 %v542
          %v590 = vunpack.c.h.b16 %v542
          %v591 = vunpack.c.l.b16 %v543
          %v592 = vunpack.c.h.b16 %v543
          %v593 = vunpack.c.l.b16 %v544
          %v594 = vunpack.c.h.b16 %v544
          %v595 = vunpack.c.l.b16 %v545
          %v596 = vunpack.c.h.b16 %v545
          %v597 = vunpack.c.l.b16 %v546
          %v598 = vunpack.c.h.b16 %v546
          %v599 = vunpack.c.l.b16 %v547
          %v600 = vunpack.c.h.b16 %v547
          %v601 = vunpack.c.l.b16 %v548
          %v602 = vunpack.c.h.b16 %v548
          %v603 = vunpack.c.l.b16 %v549
          %v604 = vunpack.c.h.b16 %v549
          %v605 = vunpack.c.l.b16 %v550
          %v606 = vunpack.c.h.b16 %v550
          %v607 = vunpack.c.l.b16 %v551
          %v608 = vunpack.c.h.b16 %v551
          %v609 = vunpack.c.l.b16 %v552
          %v610 = vunpack.c.h.b16 %v552
          %v611 = vunpack.c.l.b16 %v553
          %v612 = vunpack.c.h.b16 %v553
          %v613 = vunpack.c.l.b16 %v554
          %v614 = vunpack.c.h.b16 %v554
          %v615 = vpack.c.b16 %v585, %v583
          %v616 = vpack.c.b16 %v586, %v584
          %v617 = vpack.c.b16 %v589, %v587
          %v618 = vpack.c.b16 %v590, %v588
          %v619 = vpack.c.b16 %v593, %v591
          %v620 = vpack.c.b16 %v594, %v592
          %v621 = vpack.c.b16 %v597, %v595
          %v622 = vpack.c.b16 %v598, %v596
          %v623 = vpack.c.b16 %v601, %v599
          %v624 = vpack.c.b16 %v602, %v600
          %v625 = vpack.c.b16 %v605, %v603
          %v626 = vpack.c.b16 %v606, %v604
          %v627 = vpack.c.b16 %v609, %v607
          %v628 = vpack.c.b16 %v610, %v608
          %v629 = vpack.c.b16 %v613, %v611
          %v630 = vpack.c.b16 %v614, %v612
          %647 = vmatprep.subr.bf16.mxu0 %v630
          %648 = vmatpush1.bf16.msra.mxu0 %v629
          %649 = vmatprep.subr.bf16.mxu0 %v628
          %650 = vmatpush1.bf16.msra.mxu0 %v627
          %651 = vmatprep.subr.bf16.mxu0 %v626
          %652 = vmatpush1.bf16.msra.mxu0 %v625
          %653 = vmatprep.subr.bf16.mxu0 %v624
          %654 = vmatpush1.bf16.msra.mxu0 %v623
          %655 = vmatprep.subr.bf16.mxu0 %v622
          %656 = vmatpush1.bf16.msra.mxu0 %v621
          %657 = vmatprep.subr.bf16.mxu0 %v620
          %658 = vmatpush1.bf16.msra.mxu0 %v619
          %659 = vmatprep.subr.bf16.mxu0 %v618
          %660 = vmatpush1.bf16.msra.mxu0 %v617
          %661 = vmatprep.subr.bf16.mxu0 %v616
          %662 = vmatpush1.bf16.msra.mxu0 %v615
          %663 = vmatprep.subr.bf16.mxu0 0
          %664 = vmatpush2.bf16.msra.mxu0 0
          %665 = vmatprep.subr.bf16.mxu0 0
          %666 = vmatpush2.bf16.msra.mxu0 0
          %667 = vmatprep.subr.bf16.mxu0 0
          %668 = vmatpush2.bf16.msra.mxu0 0
          %669 = vmatprep.subr.bf16.mxu0 0
          %670 = vmatpush2.bf16.msra.mxu0 0
          %671 = vmatprep.subr.bf16.mxu0 0
          %672 = vmatpush2.bf16.msra.mxu0 0
          %673 = vmatprep.subr.bf16.mxu0 0
          %674 = vmatpush2.bf16.msra.mxu0 0
          %675 = vmatprep.subr.bf16.mxu0 0
          %676 = vmatpush2.bf16.msra.mxu0 0
          %677 = vmatprep.subr.bf16.mxu0 0
          %678 = vmatpush2.bf16.msra.mxu0 0
          %679 = vmatprep.mubr.bf16.mxu0 0
          %680 = vmatmul.mubr.bf16.gmra.mxu0 %v538
          %v681 = vpop.f32.mrf.mxu0
          %v682 = vadd.f32 %v560, %v681
          %v683 = vpop.f32.mrf.mxu0
          %v684 = vadd.f32 %v564, %v683
          %v685 = vpop.f32.mrf.mxu0
          %v686 = vadd.f32 %v560, %v685
          %v687 = vpop.f32.mrf.mxu0
          %v688 = vadd.f32 %v564, %v687
          %689 = vdwg.mxu0
          %v690 = vmax.f32 %v682, 0.0
          %v691 = vmax.f32 %v684, 0.0
          %v692 = vmax.f32 %v686, 0.0
          %v693 = vmax.f32 %v688, 0.0
          %v694 = vpack.c.bf16 %v692, %v690
          %v695 = vpack.c.bf16 %v693, %v691
          %v696 = vld [vmem:[#allocation9] sm:$0xff]
          %v697 = vld [vmem:[#allocation9 + $0x8] sm:$0xff]
          %v698 = vld [vmem:[#allocation9 + $0x10] sm:$0xff]
          %v699 = vld [vmem:[#allocation9 + $0x18] sm:$0xff]
          %v700 = vld [vmem:[#allocation9 + $0x20] sm:$0xff]
          %v701 = vld [vmem:[#allocation9 + $0x28] sm:$0xff]
          %v702 = vld [vmem:[#allocation9 + $0x30] sm:$0xff]
          %v703 = vld [vmem:[#allocation9 + $0x38] sm:$0xff]
          %v704 = vld [vmem:[#allocation9 + $0x40] sm:$0xff]
          %v705 = vld [vmem:[#allocation9 + $0x48] sm:$0xff]
          %v706 = vld [vmem:[#allocation9 + $0x50] sm:$0xff]
          %v707 = vld [vmem:[#allocation9 + $0x58] sm:$0xff]
          %v708 = vld [vmem:[#allocation9 + $0x60] sm:$0xff]
          %v709 = vld [vmem:[#allocation9 + $0x68] sm:$0xff]
          %v710 = vld [vmem:[#allocation9 + $0x70] sm:$0xff]
          %v711 = vld [vmem:[#allocation9 + $0x78] sm:$0xff]
          %v712 = vld [vmem:[#allocation9 + $0x80] sm:$0xff]
          %v713 = vld [vmem:[#allocation9 + $0x88] sm:$0xff]
          %v714 = vld [vmem:[#allocation9 + $0x90] sm:$0xff]
          %v715 = vld [vmem:[#allocation9 + $0x98] sm:$0xff]
          %v716 = vld [vmem:[#allocation9 + $0xa0] sm:$0xff]
          %v717 = vld [vmem:[#allocation9 + $0xa8] sm:$0xff]
          %v718 = vld [vmem:[#allocation9 + $0xb0] sm:$0xff]
          %v719 = vld [vmem:[#allocation9 + $0xb8] sm:$0xff]
          %v720 = vld [vmem:[#allocation9 + $0xc0] sm:$0xff]
          %v721 = vld [vmem:[#allocation9 + $0xc8] sm:$0xff]
          %v722 = vld [vmem:[#allocation9 + $0xd0] sm:$0xff]
          %v723 = vld [vmem:[#allocation9 + $0xd8] sm:$0xff]
          %v724 = vld [vmem:[#allocation9 + $0xe0] sm:$0xff]
          %v725 = vld [vmem:[#allocation9 + $0xe8] sm:$0xff]
          %v726 = vld [vmem:[#allocation9 + $0xf0] sm:$0xff]
          %v727 = vld [vmem:[#allocation9 + $0xf8] sm:$0xff]
          %v728 = vld [vmem:[#allocation9 + $0x100] sm:$0xff]
          %v729 = vld [vmem:[#allocation9 + $0x108] sm:$0xff]
          %v730 = vld [vmem:[#allocation9 + $0x110] sm:$0xff]
          %v731 = vld [vmem:[#allocation9 + $0x118] sm:$0xff]
          %v732 = vld [vmem:[#allocation9 + $0x120] sm:$0xff]
          %v733 = vld [vmem:[#allocation9 + $0x128] sm:$0xff]
          %v734 = vld [vmem:[#allocation9 + $0x130] sm:$0xff]
          %v735 = vld [vmem:[#allocation9 + $0x138] sm:$0xff]
          %v736 = vld [vmem:[#allocation9 + $0x140] sm:$0xff]
          %v737 = vld [vmem:[#allocation9 + $0x148] sm:$0xff]
          %v738 = vld [vmem:[#allocation9 + $0x150] sm:$0xff]
          %v739 = vld [vmem:[#allocation9 + $0x158] sm:$0xff]
          %v740 = vld [vmem:[#allocation9 + $0x160] sm:$0xff]
          %v741 = vld [vmem:[#allocation9 + $0x168] sm:$0xff]
          %v742 = vld [vmem:[#allocation9 + $0x170] sm:$0xff]
          %v743 = vld [vmem:[#allocation9 + $0x178] sm:$0xff]
          %v744 = vld [vmem:[#allocation9 + $0x180] sm:$0xff]
          %v745 = vld [vmem:[#allocation9 + $0x188] sm:$0xff]
          %v746 = vld [vmem:[#allocation9 + $0x190] sm:$0xff]
          %v747 = vld [vmem:[#allocation9 + $0x198] sm:$0xff]
          %v748 = vld [vmem:[#allocation9 + $0x1a0] sm:$0xff]
          %v749 = vld [vmem:[#allocation9 + $0x1a8] sm:$0xff]
          %v750 = vld [vmem:[#allocation9 + $0x1b0] sm:$0xff]
          %v751 = vld [vmem:[#allocation9 + $0x1b8] sm:$0xff]
          %v752 = vld [vmem:[#allocation9 + $0x1c0] sm:$0xff]
          %v753 = vld [vmem:[#allocation9 + $0x1c8] sm:$0xff]
          %v754 = vld [vmem:[#allocation9 + $0x1d0] sm:$0xff]
          %v755 = vld [vmem:[#allocation9 + $0x1d8] sm:$0xff]
          %v756 = vld [vmem:[#allocation9 + $0x1e0] sm:$0xff]
          %v757 = vld [vmem:[#allocation9 + $0x1e8] sm:$0xff]
          %v758 = vld [vmem:[#allocation9 + $0x1f0] sm:$0xff]
          %v759 = vld [vmem:[#allocation9 + $0x1f8] sm:$0xff]
          %v760 = vld [vmem:[%s6] sm:$0xf]
          %v762 = vlaneseq
          %v763 = vshrl.u32 %v762, 7
          %v764 = vsub.s32 0, %v763
          %v765 = vrot.slane %v760, %v764
          %v766 = vlaneseq
          %v767 = vshrl.u32 %v766, 7
          %v768 = vsub.s32 1, %v767
          %v769 = vrot.slane %v760, %v768
          %v770 = vlaneseq
          %v771 = vshrl.u32 %v770, 7
          %v772 = vsub.s32 2, %v771
          %v773 = vrot.slane %v760, %v772
          %v774 = vlaneseq
          %v775 = vshrl.u32 %v774, 7
          %v776 = vsub.s32 3, %v775
          %v777 = vrot.slane %v760, %v776
          %v846 = vunpack.c.l.b16 %v696
          %v847 = vunpack.c.h.b16 %v696
          %v848 = vunpack.c.l.b16 %v697
          %v849 = vunpack.c.h.b16 %v697
          %v850 = vunpack.c.l.b16 %v698
          %v851 = vunpack.c.h.b16 %v698
          %v852 = vunpack.c.l.b16 %v699
          %v853 = vunpack.c.h.b16 %v699
          %v854 = vunpack.c.l.b16 %v700
          %v855 = vunpack.c.h.b16 %v700
          %v856 = vunpack.c.l.b16 %v701
          %v857 = vunpack.c.h.b16 %v701
          %v858 = vunpack.c.l.b16 %v702
          %v859 = vunpack.c.h.b16 %v702
          %v860 = vunpack.c.l.b16 %v703
          %v861 = vunpack.c.h.b16 %v703
          %v862 = vunpack.c.l.b16 %v704
          %v863 = vunpack.c.h.b16 %v704
          %v864 = vunpack.c.l.b16 %v705
          %v865 = vunpack.c.h.b16 %v705
          %v866 = vunpack.c.l.b16 %v706
          %v867 = vunpack.c.h.b16 %v706
          %v868 = vunpack.c.l.b16 %v707
          %v869 = vunpack.c.h.b16 %v707
          %v870 = vunpack.c.l.b16 %v708
          %v871 = vunpack.c.h.b16 %v708
          %v872 = vunpack.c.l.b16 %v709
          %v873 = vunpack.c.h.b16 %v709
          %v874 = vunpack.c.l.b16 %v710
          %v875 = vunpack.c.h.b16 %v710
          %v876 = vunpack.c.l.b16 %v711
          %v877 = vunpack.c.h.b16 %v711
          %v878 = vunpack.c.l.b16 %v712
          %v879 = vunpack.c.h.b16 %v712
          %v880 = vunpack.c.l.b16 %v713
          %v881 = vunpack.c.h.b16 %v713
          %v882 = vunpack.c.l.b16 %v714
          %v883 = vunpack.c.h.b16 %v714
          %v884 = vunpack.c.l.b16 %v715
          %v885 = vunpack.c.h.b16 %v715
          %v886 = vunpack.c.l.b16 %v716
          %v887 = vunpack.c.h.b16 %v716
          %v888 = vunpack.c.l.b16 %v717
          %v889 = vunpack.c.h.b16 %v717
          %v890 = vunpack.c.l.b16 %v718
          %v891 = vunpack.c.h.b16 %v718
          %v892 = vunpack.c.l.b16 %v719
          %v893 = vunpack.c.h.b16 %v719
          %v894 = vunpack.c.l.b16 %v720
          %v895 = vunpack.c.h.b16 %v720
          %v896 = vunpack.c.l.b16 %v721
          %v897 = vunpack.c.h.b16 %v721
          %v898 = vunpack.c.l.b16 %v722
          %v899 = vunpack.c.h.b16 %v722
          %v900 = vunpack.c.l.b16 %v723
          %v901 = vunpack.c.h.b16 %v723
          %v902 = vunpack.c.l.b16 %v724
          %v903 = vunpack.c.h.b16 %v724
          %v904 = vunpack.c.l.b16 %v725
          %v905 = vunpack.c.h.b16 %v725
          %v906 = vunpack.c.l.b16 %v726
          %v907 = vunpack.c.h.b16 %v726
          %v908 = vunpack.c.l.b16 %v727
          %v909 = vunpack.c.h.b16 %v727
          %v910 = vunpack.c.l.b16 %v728
          %v911 = vunpack.c.h.b16 %v728
          %v912 = vunpack.c.l.b16 %v729
          %v913 = vunpack.c.h.b16 %v729
          %v914 = vunpack.c.l.b16 %v730
          %v915 = vunpack.c.h.b16 %v730
          %v916 = vunpack.c.l.b16 %v731
          %v917 = vunpack.c.h.b16 %v731
          %v918 = vunpack.c.l.b16 %v732
          %v919 = vunpack.c.h.b16 %v732
          %v920 = vunpack.c.l.b16 %v733
          %v921 = vunpack.c.h.b16 %v733
          %v922 = vunpack.c.l.b16 %v734
          %v923 = vunpack.c.h.b16 %v734
          %v924 = vunpack.c.l.b16 %v735
          %v925 = vunpack.c.h.b16 %v735
          %v926 = vunpack.c.l.b16 %v736
          %v927 = vunpack.c.h.b16 %v736
          %v928 = vunpack.c.l.b16 %v737
          %v929 = vunpack.c.h.b16 %v737
          %v930 = vunpack.c.l.b16 %v738
          %v931 = vunpack.c.h.b16 %v738
          %v932 = vunpack.c.l.b16 %v739
          %v933 = vunpack.c.h.b16 %v739
          %v934 = vunpack.c.l.b16 %v740
          %v935 = vunpack.c.h.b16 %v740
          %v936 = vunpack.c.l.b16 %v741
          %v937 = vunpack.c.h.b16 %v741
          %v938 = vunpack.c.l.b16 %v742
          %v939 = vunpack.c.h.b16 %v742
          %v940 = vunpack.c.l.b16 %v743
          %v941 = vunpack.c.h.b16 %v743
          %v942 = vunpack.c.l.b16 %v744
          %v943 = vunpack.c.h.b16 %v744
          %v944 = vunpack.c.l.b16 %v745
          %v945 = vunpack.c.h.b16 %v745
          %v946 = vunpack.c.l.b16 %v746
          %v947 = vunpack.c.h.b16 %v746
          %v948 = vunpack.c.l.b16 %v747
          %v949 = vunpack.c.h.b16 %v747
          %v950 = vunpack.c.l.b16 %v748
          %v951 = vunpack.c.h.b16 %v748
          %v952 = vunpack.c.l.b16 %v749
          %v953 = vunpack.c.h.b16 %v749
          %v954 = vunpack.c.l.b16 %v750
          %v955 = vunpack.c.h.b16 %v750
          %v956 = vunpack.c.l.b16 %v751
          %v957 = vunpack.c.h.b16 %v751
          %v958 = vunpack.c.l.b16 %v752
          %v959 = vunpack.c.h.b16 %v752
          %v960 = vunpack.c.l.b16 %v753
          %v961 = vunpack.c.h.b16 %v753
          %v962 = vunpack.c.l.b16 %v754
          %v963 = vunpack.c.h.b16 %v754
          %v964 = vunpack.c.l.b16 %v755
          %v965 = vunpack.c.h.b16 %v755
          %v966 = vunpack.c.l.b16 %v756
          %v967 = vunpack.c.h.b16 %v756
          %v968 = vunpack.c.l.b16 %v757
          %v969 = vunpack.c.h.b16 %v757
          %v970 = vunpack.c.l.b16 %v758
          %v971 = vunpack.c.h.b16 %v758
          %v972 = vunpack.c.l.b16 %v759
          %v973 = vunpack.c.h.b16 %v759
          %v974 = vpack.c.b16 %v850, %v846
          %v975 = vpack.c.b16 %v851, %v847
          %v976 = vpack.c.b16 %v852, %v848
          %v977 = vpack.c.b16 %v853, %v849
          %v978 = vpack.c.b16 %v858, %v854
          %v979 = vpack.c.b16 %v859, %v855
          %v980 = vpack.c.b16 %v860, %v856
          %v981 = vpack.c.b16 %v861, %v857
          %v982 = vpack.c.b16 %v866, %v862
          %v983 = vpack.c.b16 %v867, %v863
          %v984 = vpack.c.b16 %v868, %v864
          %v985 = vpack.c.b16 %v869, %v865
          %v986 = vpack.c.b16 %v874, %v870
          %v987 = vpack.c.b16 %v875, %v871
          %v988 = vpack.c.b16 %v876, %v872
          %v989 = vpack.c.b16 %v877, %v873
          %v990 = vpack.c.b16 %v882, %v878
          %v991 = vpack.c.b16 %v883, %v879
          %v992 = vpack.c.b16 %v884, %v880
          %v993 = vpack.c.b16 %v885, %v881
          %v994 = vpack.c.b16 %v890, %v886
          %v995 = vpack.c.b16 %v891, %v887
          %v996 = vpack.c.b16 %v892, %v888
          %v997 = vpack.c.b16 %v893, %v889
          %v998 = vpack.c.b16 %v898, %v894
          %v999 = vpack.c.b16 %v899, %v895
          %v1000 = vpack.c.b16 %v900, %v896
          %v1001 = vpack.c.b16 %v901, %v897
          %v1002 = vpack.c.b16 %v906, %v902
          %v1003 = vpack.c.b16 %v907, %v903
          %v1004 = vpack.c.b16 %v908, %v904
          %v1005 = vpack.c.b16 %v909, %v905
          %v1006 = vpack.c.b16 %v914, %v910
          %v1007 = vpack.c.b16 %v915, %v911
          %v1008 = vpack.c.b16 %v916, %v912
          %v1009 = vpack.c.b16 %v917, %v913
          %v1010 = vpack.c.b16 %v922, %v918
          %v1011 = vpack.c.b16 %v923, %v919
          %v1012 = vpack.c.b16 %v924, %v920
          %v1013 = vpack.c.b16 %v925, %v921
          %v1014 = vpack.c.b16 %v930, %v926
          %v1015 = vpack.c.b16 %v931, %v927
          %v1016 = vpack.c.b16 %v932, %v928
          %v1017 = vpack.c.b16 %v933, %v929
          %v1018 = vpack.c.b16 %v938, %v934
          %v1019 = vpack.c.b16 %v939, %v935
          %v1020 = vpack.c.b16 %v940, %v936
          %v1021 = vpack.c.b16 %v941, %v937
          %v1022 = vpack.c.b16 %v946, %v942
          %v1023 = vpack.c.b16 %v947, %v943
          %v1024 = vpack.c.b16 %v948, %v944
          %v1025 = vpack.c.b16 %v949, %v945
          %v1026 = vpack.c.b16 %v954, %v950
          %v1027 = vpack.c.b16 %v955, %v951
          %v1028 = vpack.c.b16 %v956, %v952
          %v1029 = vpack.c.b16 %v957, %v953
          %v1030 = vpack.c.b16 %v962, %v958
          %v1031 = vpack.c.b16 %v963, %v959
          %v1032 = vpack.c.b16 %v964, %v960
          %v1033 = vpack.c.b16 %v965, %v961
          %v1034 = vpack.c.b16 %v970, %v966
          %v1035 = vpack.c.b16 %v971, %v967
          %v1036 = vpack.c.b16 %v972, %v968
          %v1037 = vpack.c.b16 %v973, %v969
          %1102 = vmatprep.subr.bf16.mxu0 %v1003
          %1103 = vmatpush1.bf16.msra.mxu0 %v1002
          %1104 = vmatprep.subr.bf16.mxu0 %v999
          %1105 = vmatpush1.bf16.msra.mxu0 %v998
          %1106 = vmatprep.subr.bf16.mxu0 %v995
          %1107 = vmatpush1.bf16.msra.mxu0 %v994
          %1108 = vmatprep.subr.bf16.mxu0 %v991
          %1109 = vmatpush1.bf16.msra.mxu0 %v990
          %1110 = vmatprep.subr.bf16.mxu0 %v987
          %1111 = vmatpush1.bf16.msra.mxu0 %v986
          %1112 = vmatprep.subr.bf16.mxu0 %v983
          %1113 = vmatpush1.bf16.msra.mxu0 %v982
          %1114 = vmatprep.subr.bf16.mxu0 %v979
          %1115 = vmatpush1.bf16.msra.mxu0 %v978
          %1116 = vmatprep.subr.bf16.mxu0 %v975
          %1117 = vmatpush1.bf16.msra.mxu0 %v974
          %1118 = vmatprep.subr.bf16.mxu0 %v1035
          %1119 = vmatpush2.bf16.msra.mxu0 %v1034
          %1120 = vmatprep.subr.bf16.mxu0 %v1031
          %1121 = vmatpush2.bf16.msra.mxu0 %v1030
          %1122 = vmatprep.subr.bf16.mxu0 %v1027
          %1123 = vmatpush2.bf16.msra.mxu0 %v1026
          %1124 = vmatprep.subr.bf16.mxu0 %v1023
          %1125 = vmatpush2.bf16.msra.mxu0 %v1022
          %1126 = vmatprep.subr.bf16.mxu0 %v1019
          %1127 = vmatpush2.bf16.msra.mxu0 %v1018
          %1128 = vmatprep.subr.bf16.mxu0 %v1015
          %1129 = vmatpush2.bf16.msra.mxu0 %v1014
          %1130 = vmatprep.subr.bf16.mxu0 %v1011
          %1131 = vmatpush2.bf16.msra.mxu0 %v1010
          %1132 = vmatprep.subr.bf16.mxu0 %v1007
          %1133 = vmatpush2.bf16.msra.mxu0 %v1006
          %1134 = vmatprep.mubr.bf16.mxu0 %v695
          %1135 = vmatmul.mubr.bf16.gmra.mxu0 %v694
          %v1136 = vpop.f32.mrf.mxu0
          %v1137 = vadd.f32 %v765, %v1136
          %v1138 = vpop.f32.mrf.mxu0
          %v1139 = vadd.f32 %v769, %v1138
          %v1140 = vpop.f32.mrf.mxu0
          %v1141 = vadd.f32 %v765, %v1140
          %v1142 = vpop.f32.mrf.mxu0
          %v1143 = vadd.f32 %v769, %v1142
          %1144 = vdwg.mxu0
          %1145 = vmatprep.subr.bf16.mxu0 %v1005
          %1146 = vmatpush1.bf16.msra.mxu0 %v1004
          %1147 = vmatprep.subr.bf16.mxu0 %v1001
          %1148 = vmatpush1.bf16.msra.mxu0 %v1000
          %1149 = vmatprep.subr.bf16.mxu0 %v997
          %1150 = vmatpush1.bf16.msra.mxu0 %v996
          %1151 = vmatprep.subr.bf16.mxu0 %v993
          %1152 = vmatpush1.bf16.msra.mxu0 %v992
          %1153 = vmatprep.subr.bf16.mxu0 %v989
          %1154 = vmatpush1.bf16.msra.mxu0 %v988
          %1155 = vmatprep.subr.bf16.mxu0 %v985
          %1156 = vmatpush1.bf16.msra.mxu0 %v984
          %1157 = vmatprep.subr.bf16.mxu0 %v981
          %1158 = vmatpush1.bf16.msra.mxu0 %v980
          %1159 = vmatprep.subr.bf16.mxu0 %v977
          %1160 = vmatpush1.bf16.msra.mxu0 %v976
          %1161 = vmatprep.subr.bf16.mxu0 %v1037
          %1162 = vmatpush2.bf16.msra.mxu0 %v1036
          %1163 = vmatprep.subr.bf16.mxu0 %v1033
          %1164 = vmatpush2.bf16.msra.mxu0 %v1032
          %1165 = vmatprep.subr.bf16.mxu0 %v1029
          %1166 = vmatpush2.bf16.msra.mxu0 %v1028
          %1167 = vmatprep.subr.bf16.mxu0 %v1025
          %1168 = vmatpush2.bf16.msra.mxu0 %v1024
          %1169 = vmatprep.subr.bf16.mxu0 %v1021
          %1170 = vmatpush2.bf16.msra.mxu0 %v1020
          %1171 = vmatprep.subr.bf16.mxu0 %v1017
          %1172 = vmatpush2.bf16.msra.mxu0 %v1016
          %1173 = vmatprep.subr.bf16.mxu0 %v1013
          %1174 = vmatpush2.bf16.msra.mxu0 %v1012
          %1175 = vmatprep.subr.bf16.mxu0 %v1009
          %1176 = vmatpush2.bf16.msra.mxu0 %v1008
          %1177 = vmatprep.mubr.bf16.mxu0 %v695
          %1178 = vmatmul.mubr.bf16.gmra.mxu0 %v694
          %v1179 = vpop.f32.mrf.mxu0
          %v1180 = vadd.f32 %v773, %v1179
          %v1181 = vpop.f32.mrf.mxu0
          %v1182 = vadd.f32 %v777, %v1181
          %v1183 = vpop.f32.mrf.mxu0
          %v1184 = vadd.f32 %v773, %v1183
          %v1185 = vpop.f32.mrf.mxu0
          %v1186 = vadd.f32 %v777, %v1185
          %1187 = vdwg.mxu0
          %v1188 = vmax.f32 %v1137, 0.0
          %v1189 = vmax.f32 %v1139, 0.0
          %v1190 = vmax.f32 %v1180, 0.0
          %v1191 = vmax.f32 %v1182, 0.0
          %v1192 = vmax.f32 %v1141, 0.0
          %v1193 = vmax.f32 %v1143, 0.0
          %v1194 = vmax.f32 %v1184, 0.0
          %v1195 = vmax.f32 %v1186, 0.0
          %v1196 = vpack.c.bf16 %v1192, %v1188
          %v1197 = vpack.c.bf16 %v1193, %v1189
          %v1198 = vpack.c.bf16 %v1194, %v1190
          %v1199 = vpack.c.bf16 %v1195, %v1191
          %v1204 = vunpack.c.l.b16 %v1196
          %v1205 = vunpack.c.l.b16 %v1197
          %v1206 = vunpack.c.l.b16 %v1198
          %v1207 = vunpack.c.l.b16 %v1199
          %v1208 = vunpack.c.h.b16 %v1196
          %v1209 = vunpack.c.h.b16 %v1197
          %v1210 = vunpack.c.h.b16 %v1198
          %v1211 = vunpack.c.h.b16 %v1199
          %v1212 = vpack.c.b16 %v1205, %v1204
          %v1213 = vpack.c.b16 %v1207, %v1206
          %v1214 = vpack.c.b16 %v1209, %v1208
          %v1215 = vpack.c.b16 %v1211, %v1210
          %1220 = vst [vmem:[#allocation2] sm:$0xff] %v1212
          %1221 = vst [vmem:[#allocation2 + $0x8] sm:$0xff] %v1213
          %1222 = vst [vmem:[#allocation2 + $0x10] sm:$0xff] %v1214
          %1223 = vst [vmem:[#allocation2 + $0x18] sm:$0xff] %v1215
        $region80: #{tpu_custom_call.1} parent=55 // pred_fallthru
          _
        %v1224 = vld [vmem:[#allocation2] sm:$0xff]
        %v1225 = vld [vmem:[#allocation2 + $0x8] sm:$0xff]
        %v1226 = vld [vmem:[#allocation2 + $0x10] sm:$0xff]
        %v1227 = vld [vmem:[#allocation2 + $0x18] sm:$0xff]
        %v1228 = vld [vmem:[%s401] sm:$0xf]
        %v1229 = vld [vmem:[%s401 + $0x4] sm:$0xf]
        %v1230 = vld [vmem:[%s401 + $0x8] sm:$0xf]
        %v1231 = vld [vmem:[%s401 + $0xc] sm:$0xf]
        %v1232 = vld [vmem:[%s401 + $0x10] sm:$0xf]
        %v1233 = vld [vmem:[%s401 + $0x14] sm:$0xf]
        %v1234 = vld [vmem:[%s401 + $0x18] sm:$0xf]
        %v1235 = vld [vmem:[%s401 + $0x1c] sm:$0xf]
        %v1236 = vld [vmem:[%s401 + $0x20] sm:$0xf]
        %v1237 = vld [vmem:[%s401 + $0x24] sm:$0xf]
        %v1238 = vld [vmem:[%s401 + $0x28] sm:$0xf]
        %v1239 = vld [vmem:[%s401 + $0x2c] sm:$0xf]
        %v1240 = vld [vmem:[%s401 + $0x30] sm:$0xf]
        %v1241 = vld [vmem:[%s401 + $0x34] sm:$0xf]
        %v1242 = vld [vmem:[%s401 + $0x38] sm:$0xf]
        %v1243 = vld [vmem:[%s401 + $0x3c] sm:$0xf]
        %v1244 = vld [vmem:[%s401 + $0x40] sm:$0xf]
        %v1245 = vld [vmem:[%s401 + $0x44] sm:$0xf]
        %v1246 = vld [vmem:[%s401 + $0x48] sm:$0xf]
        %v1247 = vld [vmem:[%s401 + $0x4c] sm:$0xf]
        %v1248 = vld [vmem:[%s401 + $0x50] sm:$0xf]
        %v1249 = vld [vmem:[%s401 + $0x54] sm:$0xf]
        %v1250 = vld [vmem:[%s401 + $0x58] sm:$0xf]
        %v1251 = vld [vmem:[%s401 + $0x5c] sm:$0xf]
        %v1252 = vld [vmem:[%s401 + $0x60] sm:$0xf]
        %v1253 = vld [vmem:[%s401 + $0x64] sm:$0xf]
        %v1254 = vld [vmem:[%s401 + $0x68] sm:$0xf]
        %v1255 = vld [vmem:[%s401 + $0x6c] sm:$0xf]
        %v1256 = vld [vmem:[%s401 + $0x70] sm:$0xf]
        %v1257 = vld [vmem:[%s401 + $0x74] sm:$0xf]
        %v1258 = vld [vmem:[%s401 + $0x78] sm:$0xf]
        %v1259 = vld [vmem:[%s401 + $0x7c] sm:$0xf]
        %v1260 = vld [vmem:[%s401 + $0x80] sm:$0xf]
        %v1261 = vld [vmem:[%s401 + $0x84] sm:$0xf]
        %v1262 = vld [vmem:[%s401 + $0x88] sm:$0xf]
        %v1263 = vld [vmem:[%s401 + $0x8c] sm:$0xf]
        %v1264 = vld [vmem:[%s401 + $0x90] sm:$0xf]
        %v1265 = vld [vmem:[%s401 + $0x94] sm:$0xf]
        %v1266 = vld [vmem:[%s401 + $0x98] sm:$0xf]
        %v1267 = vld [vmem:[%s401 + $0x9c] sm:$0xf]
        %v1268 = vld [vmem:[%s401 + $0xa0] sm:$0xf]
        %v1269 = vld [vmem:[%s401 + $0xa4] sm:$0xf]
        %v1270 = vld [vmem:[%s401 + $0xa8] sm:$0xf]
        %v1271 = vld [vmem:[%s401 + $0xac] sm:$0xf]
        %v1272 = vld [vmem:[%s401 + $0xb0] sm:$0xf]
        %v1273 = vld [vmem:[%s401 + $0xb4] sm:$0xf]
        %v1274 = vld [vmem:[%s401 + $0xb8] sm:$0xf]
        %v1275 = vld [vmem:[%s401 + $0xbc] sm:$0xf]
        %v1276 = vld [vmem:[%s401 + $0xc0] sm:$0xf]
        %v1277 = vld [vmem:[%s401 + $0xc4] sm:$0xf]
        %v1278 = vld [vmem:[%s401 + $0xc8] sm:$0xf]
        %v1279 = vld [vmem:[%s401 + $0xcc] sm:$0xf]
        %v1280 = vld [vmem:[%s401 + $0xd0] sm:$0xf]
        %v1281 = vld [vmem:[%s401 + $0xd4] sm:$0xf]
        %v1282 = vld [vmem:[%s401 + $0xd8] sm:$0xf]
        %v1283 = vld [vmem:[%s401 + $0xdc] sm:$0xf]
        %v1284 = vld [vmem:[%s401 + $0xe0] sm:$0xf]
        %v1285 = vld [vmem:[%s401 + $0xe4] sm:$0xf]
        %v1286 = vld [vmem:[%s401 + $0xe8] sm:$0xf]
        %v1287 = vld [vmem:[%s401 + $0xec] sm:$0xf]
        %v1288 = vld [vmem:[%s401 + $0xf0] sm:$0xf]
        %v1289 = vld [vmem:[%s401 + $0xf4] sm:$0xf]
        %v1290 = vld [vmem:[%s401 + $0xf8] sm:$0xf]
        %v1291 = vld [vmem:[%s401 + $0xfc] sm:$0xf]
        %v1292 = vld [vmem:[%s442] sm:$0x1]
        %v1294 = vlaneseq
        %v1295 = vshrl.u32 %v1294, 7
        %v1296 = vsub.s32 0, %v1295
        %v1297 = vrot.slane %v1292, %v1296
        %v1303 = vunpack.c.l.b16 %v1224
        %v1304 = vunpack.c.h.b16 %v1224
        %v1305 = vunpack.c.l.b16 %v1225
        %v1306 = vunpack.c.h.b16 %v1225
        %v1307 = vunpack.c.l.b16 %v1226
        %v1308 = vunpack.c.h.b16 %v1226
        %v1309 = vunpack.c.l.b16 %v1227
        %v1310 = vunpack.c.h.b16 %v1227
        %v1311 = vpack.c.b16 %v1307, %v1303
        %v1312 = vpack.c.b16 %v1308, %v1304
        %v1313 = vpack.c.b16 %v1309, %v1305
        %v1314 = vpack.c.b16 %v1310, %v1306
        %v1383 = vunpack.c.l.b16 %v1228
        %v1384 = vunpack.c.l.b16 %v1229
        %v1385 = vunpack.c.l.b16 %v1230
        %v1386 = vunpack.c.l.b16 %v1231
        %v1387 = vunpack.c.l.b16 %v1232
        %v1388 = vunpack.c.l.b16 %v1233
        %v1389 = vunpack.c.l.b16 %v1234
        %v1390 = vunpack.c.l.b16 %v1235
        %v1391 = vunpack.c.l.b16 %v1236
        %v1392 = vunpack.c.l.b16 %v1237
        %v1393 = vunpack.c.l.b16 %v1238
        %v1394 = vunpack.c.l.b16 %v1239
        %v1395 = vunpack.c.l.b16 %v1240
        %v1396 = vunpack.c.l.b16 %v1241
        %v1397 = vunpack.c.l.b16 %v1242
        %v1398 = vunpack.c.l.b16 %v1243
        %v1399 = vunpack.c.l.b16 %v1244
        %v1400 = vunpack.c.l.b16 %v1245
        %v1401 = vunpack.c.l.b16 %v1246
        %v1402 = vunpack.c.l.b16 %v1247
        %v1403 = vunpack.c.l.b16 %v1248
        %v1404 = vunpack.c.l.b16 %v1249
        %v1405 = vunpack.c.l.b16 %v1250
        %v1406 = vunpack.c.l.b16 %v1251
        %v1407 = vunpack.c.l.b16 %v1252
        %v1408 = vunpack.c.l.b16 %v1253
        %v1409 = vunpack.c.l.b16 %v1254
        %v1410 = vunpack.c.l.b16 %v1255
        %v1411 = vunpack.c.l.b16 %v1256
        %v1412 = vunpack.c.l.b16 %v1257
        %v1413 = vunpack.c.l.b16 %v1258
        %v1414 = vunpack.c.l.b16 %v1259
        %v1415 = vunpack.c.l.b16 %v1260
        %v1416 = vunpack.c.l.b16 %v1261
        %v1417 = vunpack.c.l.b16 %v1262
        %v1418 = vunpack.c.l.b16 %v1263
        %v1419 = vunpack.c.l.b16 %v1264
        %v1420 = vunpack.c.l.b16 %v1265
        %v1421 = vunpack.c.l.b16 %v1266
        %v1422 = vunpack.c.l.b16 %v1267
        %v1423 = vunpack.c.l.b16 %v1268
        %v1424 = vunpack.c.l.b16 %v1269
        %v1425 = vunpack.c.l.b16 %v1270
        %v1426 = vunpack.c.l.b16 %v1271
        %v1427 = vunpack.c.l.b16 %v1272
        %v1428 = vunpack.c.l.b16 %v1273
        %v1429 = vunpack.c.l.b16 %v1274
        %v1430 = vunpack.c.l.b16 %v1275
        %v1431 = vunpack.c.l.b16 %v1276
        %v1432 = vunpack.c.l.b16 %v1277
        %v1433 = vunpack.c.l.b16 %v1278
        %v1434 = vunpack.c.l.b16 %v1279
        %v1435 = vunpack.c.l.b16 %v1280
        %v1436 = vunpack.c.l.b16 %v1281
        %v1437 = vunpack.c.l.b16 %v1282
        %v1438 = vunpack.c.l.b16 %v1283
        %v1439 = vunpack.c.l.b16 %v1284
        %v1440 = vunpack.c.l.b16 %v1285
        %v1441 = vunpack.c.l.b16 %v1286
        %v1442 = vunpack.c.l.b16 %v1287
        %v1443 = vunpack.c.l.b16 %v1288
        %v1444 = vunpack.c.l.b16 %v1289
        %v1445 = vunpack.c.l.b16 %v1290
        %v1446 = vunpack.c.l.b16 %v1291
        %v1447 = vpack.c.b16 %v1384, %v1383
        %v1448 = vpack.c.b16 %v1386, %v1385
        %v1449 = vpack.c.b16 %v1388, %v1387
        %v1450 = vpack.c.b16 %v1390, %v1389
        %v1451 = vpack.c.b16 %v1392, %v1391
        %v1452 = vpack.c.b16 %v1394, %v1393
        %v1453 = vpack.c.b16 %v1396, %v1395
        %v1454 = vpack.c.b16 %v1398, %v1397
        %v1455 = vpack.c.b16 %v1400, %v1399
        %v1456 = vpack.c.b16 %v1402, %v1401
        %v1457 = vpack.c.b16 %v1404, %v1403
        %v1458 = vpack.c.b16 %v1406, %v1405
        %v1459 = vpack.c.b16 %v1408, %v1407
        %v1460 = vpack.c.b16 %v1410, %v1409
        %v1461 = vpack.c.b16 %v1412, %v1411
        %v1462 = vpack.c.b16 %v1414, %v1413
        %v1463 = vpack.c.b16 %v1416, %v1415
        %v1464 = vpack.c.b16 %v1418, %v1417
        %v1465 = vpack.c.b16 %v1420, %v1419
        %v1466 = vpack.c.b16 %v1422, %v1421
        %v1467 = vpack.c.b16 %v1424, %v1423
        %v1468 = vpack.c.b16 %v1426, %v1425
        %v1469 = vpack.c.b16 %v1428, %v1427
        %v1470 = vpack.c.b16 %v1430, %v1429
        %v1471 = vpack.c.b16 %v1432, %v1431
        %v1472 = vpack.c.b16 %v1434, %v1433
        %v1473 = vpack.c.b16 %v1436, %v1435
        %v1474 = vpack.c.b16 %v1438, %v1437
        %v1475 = vpack.c.b16 %v1440, %v1439
        %v1476 = vpack.c.b16 %v1442, %v1441
        %v1477 = vpack.c.b16 %v1444, %v1443
        %v1478 = vpack.c.b16 %v1446, %v1445
        %1511 = vmatprep.subr.bf16.mxu0 0
        %1512 = vmatpush1.bf16.msra.mxu0 %v1454
        %1513 = vmatprep.subr.bf16.mxu0 0
        %1514 = vmatpush1.bf16.msra.mxu0 %v1453
        %1515 = vmatprep.subr.bf16.mxu0 0
        %1516 = vmatpush1.bf16.msra.mxu0 %v1452
        %1517 = vmatprep.subr.bf16.mxu0 0
        %1518 = vmatpush1.bf16.msra.mxu0 %v1451
        %1519 = vmatprep.subr.bf16.mxu0 0
        %1520 = vmatpush1.bf16.msra.mxu0 %v1450
        %1521 = vmatprep.subr.bf16.mxu0 0
        %1522 = vmatpush1.bf16.msra.mxu0 %v1449
        %1523 = vmatprep.subr.bf16.mxu0 0
        %1524 = vmatpush1.bf16.msra.mxu0 %v1448
        %1525 = vmatprep.subr.bf16.mxu0 0
        %1526 = vmatpush1.bf16.msra.mxu0 %v1447
        %1527 = vmatprep.subr.bf16.mxu0 0
        %1528 = vmatpush2.bf16.msra.mxu0 %v1462
        %1529 = vmatprep.subr.bf16.mxu0 0
        %1530 = vmatpush2.bf16.msra.mxu0 %v1461
        %1531 = vmatprep.subr.bf16.mxu0 0
        %1532 = vmatpush2.bf16.msra.mxu0 %v1460
        %1533 = vmatprep.subr.bf16.mxu0 0
        %1534 = vmatpush2.bf16.msra.mxu0 %v1459
        %1535 = vmatprep.subr.bf16.mxu0 0
        %1536 = vmatpush2.bf16.msra.mxu0 %v1458
        %1537 = vmatprep.subr.bf16.mxu0 0
        %1538 = vmatpush2.bf16.msra.mxu0 %v1457
        %1539 = vmatprep.subr.bf16.mxu0 0
        %1540 = vmatpush2.bf16.msra.mxu0 %v1456
        %1541 = vmatprep.subr.bf16.mxu0 0
        %1542 = vmatpush2.bf16.msra.mxu0 %v1455
        %1543 = vmatprep.mubr.bf16.mxu0 %v1312
        %1544 = vmatmul.mubr.bf16.gmra.mxu0 %v1311
        %v1545 = vpop.f32.mrf.mxu0
        %v1546 = vadd.f32 %v1297, %v1545
        %v1547 = vpop.f32.mrf.mxu0
        %v1548 = vpop.f32.mrf.mxu0
        %v1549 = vadd.f32 %v1297, %v1548
        %v1550 = vpop.f32.mrf.mxu0
        %1551 = vdwg.mxu0
        %1552 = vmatprep.subr.bf16.mxu0 0
        %1553 = vmatpush1.bf16.msra.mxu0 %v1470
        %1554 = vmatprep.subr.bf16.mxu0 0
        %1555 = vmatpush1.bf16.msra.mxu0 %v1469
        %1556 = vmatprep.subr.bf16.mxu0 0
        %1557 = vmatpush1.bf16.msra.mxu0 %v1468
        %1558 = vmatprep.subr.bf16.mxu0 0
        %1559 = vmatpush1.bf16.msra.mxu0 %v1467
        %1560 = vmatprep.subr.bf16.mxu0 0
        %1561 = vmatpush1.bf16.msra.mxu0 %v1466
        %1562 = vmatprep.subr.bf16.mxu0 0
        %1563 = vmatpush1.bf16.msra.mxu0 %v1465
        %1564 = vmatprep.subr.bf16.mxu0 0
        %1565 = vmatpush1.bf16.msra.mxu0 %v1464
        %1566 = vmatprep.subr.bf16.mxu0 0
        %1567 = vmatpush1.bf16.msra.mxu0 %v1463
        %1568 = vmatprep.subr.bf16.mxu0 0
        %1569 = vmatpush2.bf16.msra.mxu0 %v1478
        %1570 = vmatprep.subr.bf16.mxu0 0
        %1571 = vmatpush2.bf16.msra.mxu0 %v1477
        %1572 = vmatprep.subr.bf16.mxu0 0
        %1573 = vmatpush2.bf16.msra.mxu0 %v1476
        %1574 = vmatprep.subr.bf16.mxu0 0
        %1575 = vmatpush2.bf16.msra.mxu0 %v1475
        %1576 = vmatprep.subr.bf16.mxu0 0
        %1577 = vmatpush2.bf16.msra.mxu0 %v1474
        %1578 = vmatprep.subr.bf16.mxu0 0
        %1579 = vmatpush2.bf16.msra.mxu0 %v1473
        %1580 = vmatprep.subr.bf16.mxu0 0
        %1581 = vmatpush2.bf16.msra.mxu0 %v1472
        %1582 = vmatprep.subr.bf16.mxu0 0
        %1583 = vmatpush2.bf16.msra.mxu0 %v1471
        %1584 = vmatprep.mubr.bf16.mxu0 %v1314
        %1585 = vmatmul.mubr.bf16.gmra.mxu0 %v1313
        %v1586 = vpop.f32.mrf.mxu0
        %v1587 = vadd.f32 %v1546, %v1586
        %v1588 = vpop.f32.mrf.mxu0
        %v1589 = vpop.f32.mrf.mxu0
        %v1590 = vadd.f32 %v1549, %v1589
        %v1591 = vpop.f32.mrf.mxu0
        %1592 = vdwg.mxu0
        %v1593 = vtanh.pop %v1587
        %v1594 = vtanh.pop %v1590
        %1595 = vst [vmem:[%s438] sm:$0xff] %v1593
        %1596 = vst [vmem:[%s438 + $0x8] sm:$0xff] %v1594
        %s1597 = sand.u32 %s252, 1
        %s1598 = scalar_lea.sflag [#allocation5], %s1597
        %s1599 = sand.u32 %s252, 1
        %s1600 = smul.addr %s1599, 16
        %s1601 = scalar_lea.vmem [#allocation12], %s1600
        // Predicated region
        $region81: #{tpu_custom_call.1} parent=55 // pred_check
          %p1602 = pneg %p262
        $region82: #{tpu_custom_call.1} parent=55 // pred_check_branch
          %1604 = sbr.rel (%p1602) target = $region84
        $region83: #{tpu_custom_call.1} parent=55 // pred_region
          %s1605 = smul.u32 2, %s30
          %s1607 = ssub.s32 256, 256
          %1608 = vsyncadd %s1598, %s1607
          %s1609 = smul.addr %s1605, 7
          %s1610 = sadd.s32 %s31, %s1609
          %s1611 = smul.addr %s1610, 128
          %s1612 = scalar_lea.hbm %s9, %s1611
          %s1613 = sshll.u32 %s1601, 4
          %s1614 = int_to_ptr.vmem [resolvable:$true] %s1613
          %1619 = dma.vmem_to_hbm [thread:$0]  %s1614, 256, %s1612, %s1598, 128, 896, 8
        $region84: #{tpu_custom_call.1} parent=55 // pred_fallthru
          _
      $region56: #{tpu_custom_call.1} parent=5 // pred_fallthru
        _
      %p1620 = scmp.le.s32.totalorder 2, %s21
      // Predicated region
      $region85: #{tpu_custom_call.1} parent=5 // pred_check
        %p1621 = pneg %p1620
      $region86: #{tpu_custom_call.1} parent=5 // pred_check_branch
        %1623 = sbr.rel (%p1621) target = $region88
      $region87: #{tpu_custom_call.1} parent=5 // pred_region
        %s1624 = ssub.s32 %s21, 2
        // Predicated region
        $region89: #{tpu_custom_call.1} parent=87 // pred_check
          %p1625 = pneg %p268
        $region90: #{tpu_custom_call.1} parent=87 // pred_check_branch
          %1627 = sbr.rel (%p1625) target = $region92
        $region91: #{tpu_custom_call.1} parent=87 // pred_region
          %s1628 = sand.u32 %s253, 1
          %s1629 = scalar_lea.sflag [#allocation5], %s1628
          %s1630 = sand.u32 %s253, 1
          %s1631 = smul.addr %s1630, 16
          %s1632 = scalar_lea.vmem [#allocation12], %s1631
          %1633 = dma.done %s1629, 256
        $region92: #{tpu_custom_call.1} parent=87 // pred_fallthru
          _
      $region88: #{tpu_custom_call.1} parent=5 // pred_fallthru
        _
    $region6: #{tpu_custom_call.1} parent=1 // loop_footer
      %s25 = sadd.s32 1, %s21
    $region7: #{tpu_custom_call.1} parent=1 // loop_footer_branch
      %20 = sbr.rel target = $region3
    $region8: #{tpu_custom_call.1} parent=1 // loop_exit
      _
    %1634 = vsyncpa [#allocation4], 1
    %s1635 = scalar_lea.sflag [#allocation4], 1
    %1636 = vsyncpa %s1635, 1
    %1637 = vsyncpa [#allocation7], 1
    %1638 = vsyncpa [#allocation10], 1
    %1639 = vsyncpa [#allocation5], 1
    %s1640 = scalar_lea.sflag [#allocation5], 1
    %1641 = vsyncpa %s1640, 1

</llo_original>
